<compile_context>
chip_gen: v7x
topology: tpu7x:2x2x1
jax: 0.10.0
libtpu: 0.0.40
codegen_flags: <defaults>
</compile_context>

<pallas_src>
import math

import jax
import jax.numpy as jnp
import numpy as np
from jax import lax
from jax.experimental import pallas as pl

# ----------------------------- config (small) -------------------------------
B = 2            # batch
S = 8            # sequence length (power of two -> shift-based batch ids)
H = 32           # hidden_size
NH = 4           # num_attention_heads
HD = H // NH     # head_dim
I = 4 * H        # inner (MLP) dim
BS = B * S       # flattened token count
LN_EPS = 1e-5
ATTN_SCALE = 1.0 / math.sqrt(HD)           # scale_attn_weights=True
MASK_VALUE = float(jnp.finfo(jnp.float32).min)
GELU_C = math.sqrt(2.0 / math.pi)

assert S & (S - 1) == 0, "block-diagonal mask below uses shifts; S must be a power of two"
S_LOG2 = S.bit_length() - 1


# ------------------------------- kernel -------------------------------------
def gpt2_block_kernel(
    x_ref,                                    # (B*S, H)
    ln1_g_ref, ln1_b_ref,                     # (1, H)
    w_qkv_ref, b_qkv_ref,                     # (H, 3H), (1, 3H)
    w_ao_ref, b_ao_ref,                       # (H, H),  (1, H)
    ln2_g_ref, ln2_b_ref,                     # (1, H)
    w_fc_ref, b_fc_ref,                       # (H, I),  (1, I)
    w_mo_ref, b_mo_ref,                       # (I, H),  (1, H)
    out_ref, kin_ref, ktgt_ref,               # (B*S, H) each
):
    x = x_ref[...]                            # (BS, H) float32

    def layernorm(v, g, b):
        mu = jnp.mean(v, axis=-1, keepdims=True)
        var = jnp.mean((v - mu) ** 2, axis=-1, keepdims=True)
        return (v - mu) * lax.rsqrt(var + LN_EPS) * g + b

    # ---- ln_1 ----
    ln1 = layernorm(x, ln1_g_ref[...], ln1_b_ref[...])

    # ---- c_attn (fused qkv projection), M = B*S rows in one matmul ----
    qkv = jnp.dot(ln1, w_qkv_ref[...], preferred_element_type=jnp.float32) \
          + b_qkv_ref[...]                    # (BS, 3H)
    q = qkv[:, :H] * ATTN_SCALE               # fold attention scale into q once
    k = qkv[:, H:2 * H]
    v = qkv[:, 2 * H:]

    # ---- block-diagonal causal mask over the flattened token axis (built once) ----
    # attend iff (same batch element) AND (key pos <= query pos).
    row = lax.broadcasted_iota(jnp.int32, (BS, BS), 0)
    col = lax.broadcasted_iota(jnp.int32, (BS, BS), 1)
    same_batch = jnp.right_shift(row, S_LOG2) == jnp.right_shift(col, S_LOG2)
    mask = jnp.logical_and(same_batch, row >= col)

    # ---- per-head attention; both batch elements share every matmul ----
    # c_proj is folded in as a split-K accumulation over heads, so no
    # concatenate / merge-heads shuffle is needed.
    attn_out = b_ao_ref[...]                  # (1, H); broadcasts on the first add
    for h in range(NH):                       # NH=4, fully unrolled at trace time
        lo, hi = h * HD, (h + 1) * HD
        qh = q[:, lo:hi]                      # (BS, HD)
        kh = k[:, lo:hi]
        vh = v[:, lo:hi]
        # q @ k^T without an explicit transpose (contract last dims of both)
        s = lax.dot_general(qh, kh, (((1,), (1,)), ((), ())),
                            preferred_element_type=jnp.float32)      # (BS, BS)
        s = jnp.where(mask, s, MASK_VALUE)
        s = s - jnp.max(s, axis=-1, keepdims=True)
        p = jnp.exp(s)                                                # EUP
        p = p * pl.reciprocal(jnp.sum(p, axis=-1, keepdims=True), approx=False)
        ctx = jnp.dot(p, vh, preferred_element_type=jnp.float32)      # (BS, HD)
        attn_out = attn_out + jnp.dot(ctx, w_ao_ref[lo:hi, :],
                                      preferred_element_type=jnp.float32)

    # ---- residual ----
    h1 = x + attn_out                         # (BS, H)

    # ---- ln_2 ----
    ln2 = layernorm(h1, ln2_g_ref[...], ln2_b_ref[...])
    kin_ref[...] = ln2                        # kan_input

    # ---- MLP: c_fc -> gelu_new -> c_proj ----
    ff = jnp.dot(ln2, w_fc_ref[...], preferred_element_type=jnp.float32) \
         + b_fc_ref[...]                      # (BS, I)
    act = 0.5 * ff * (1.0 + jnp.tanh(GELU_C * (ff + 0.044715 * (ff * ff * ff))))
    mlp_out = jnp.dot(act, w_mo_ref[...], preferred_element_type=jnp.float32) \
              + b_mo_ref[...]                 # (BS, H)
    ktgt_ref[...] = mlp_out                   # kan_target

    # ---- final residual ----
    out_ref[...] = h1 + mlp_out


# ------------------------------ wrapper --------------------------------------
def gpt2_block(x, params):
    """x: (B, S, H) f32. Returns (hidden_states, kan_input, kan_target), each (B, S, H)."""
    (ln1_g, ln1_b, w_qkv, b_qkv, w_ao, b_ao,
     ln2_g, ln2_b, w_fc, b_fc, w_mo, b_mo) = params

    x_flat = x.reshape(BS, H)                 # free metadata reshape outside the kernel

    # Single invocation (no grid): all operands fit in VMEM (~60 KB total), so the
    # whole block runs in one step with whole-array blocks.
    # Note (v7x): a single step cannot use the second TensorCore; at B=2 / this
    # problem size the per-core fixed overhead would exceed the win anyway.
    out, kin, ktgt = pl.pallas_call(
        gpt2_block_kernel,
        out_shape=(
            jax.ShapeDtypeStruct((BS, H), jnp.float32),
            jax.ShapeDtypeStruct((BS, H), jnp.float32),
            jax.ShapeDtypeStruct((BS, H), jnp.float32),
        ),
    )(x_flat, ln1_g, ln1_b, w_qkv, b_qkv, w_ao, b_ao,
      ln2_g, ln2_b, w_fc, b_fc, w_mo, b_mo)

    return (out.reshape(B, S, H), kin.reshape(B, S, H), ktgt.reshape(B, S, H))


# ------------------------- pure-JAX reference --------------------------------
def gpt2_block_ref(x, params):
    (ln1_g, ln1_b, w_qkv, b_qkv, w_ao, b_ao,
     ln2_g, ln2_b, w_fc, b_fc, w_mo, b_mo) = params

    def layernorm(v, g, b):
        mu = jnp.mean(v, axis=-1, keepdims=True)
        var = jnp.mean((v - mu) ** 2, axis=-1, keepdims=True)
        return (v - mu) / jnp.sqrt(var + LN_EPS) * g + b

    ln1 = layernorm(x, ln1_g, ln1_b)
    qkv = ln1 @ w_qkv + b_qkv
    q, k, v = jnp.split(qkv, 3, axis=-1)

    def split_heads(t):  # (B,S,H) -> (B,NH,S,HD)
        return t.reshape(B, S, NH, HD).transpose(0, 2, 1, 3)

    qh, kh, vh = split_heads(q), split_heads(k), split_heads(v)
    scores = jnp.einsum('bhqd,bhkd->bhqk', qh, kh) * ATTN_SCALE
    causal = jnp.tril(jnp.ones((S, S), dtype=bool))
    scores = jnp.where(causal, scores, MASK_VALUE)
    p = jax.nn.softmax(scores, axis=-1)
    attn = jnp.einsum('bhqk,bhkd->bhqd', p, vh)
    attn = attn.transpose(0, 2, 1, 3).reshape(B, S, H)
    h1 = x + attn @ w_ao + b_ao

    ln2 = layernorm(h1, ln2_g, ln2_b)
    ff = ln2 @ w_fc + b_fc
    act = 0.5 * ff * (1.0 + jnp.tanh(GELU_C * (ff + 0.044715 * ff ** 3)))
    mlp_out = act @ w_mo + b_mo
    return h1 + mlp_out, ln2, mlp_out


# -------------------------------- main ----------------------------------------
if __name__ == "__main__":
    key = jax.random.PRNGKey(0)
    keys = jax.random.split(key, 6)

    x = jax.random.normal(keys[0], (B, S, H), dtype=jnp.float32)

    # Conv1D weights: normal(std=0.02), biases zero; LayerNorm: gamma=1, beta=0.
    ln1_g = jnp.ones((1, H), jnp.float32)
    ln1_b = jnp.zeros((1, H), jnp.float32)
    w_qkv = 0.02 * jax.random.normal(keys[1], (H, 3 * H), dtype=jnp.float32)
    b_qkv = jnp.zeros((1, 3 * H), jnp.float32)
    w_ao = 0.02 * jax.random.normal(keys[2], (H, H), dtype=jnp.float32)
    b_ao = jnp.zeros((1, H), jnp.float32)
    ln2_g = jnp.ones((1, H), jnp.float32)
    ln2_b = jnp.zeros((1, H), jnp.float32)
    w_fc = 0.02 * jax.random.normal(keys[3], (H, I), dtype=jnp.float32)
    b_fc = jnp.zeros((1, I), jnp.float32)
    w_mo = 0.02 * jax.random.normal(keys[4], (I, H), dtype=jnp.float32)
    b_mo = jnp.zeros((1, H), jnp.float32)

    params = (ln1_g, ln1_b, w_qkv, b_qkv, w_ao, b_ao,
              ln2_g, ln2_b, w_fc, b_fc, w_mo, b_mo)

    out, kan_in, kan_tgt = jax.block_until_ready(gpt2_block(x, params))
    ref_out, ref_in, ref_tgt = gpt2_block_ref(x, params)

    np.testing.assert_allclose(np.asarray(out), np.asarray(ref_out), rtol=1e-5, atol=1e-5)
    np.testing.assert_allclose(np.asarray(kan_in), np.asarray(ref_in), rtol=1e-5, atol=1e-5)
    np.testing.assert_allclose(np.asarray(kan_tgt), np.asarray(ref_tgt), rtol=1e-5, atol=1e-5)

    print("KERNEL_OK")
</pallas_src>

<mosaic_0001>
module attributes {stable_mosaic.version = 11 : i64} {
  func.func @gpt2_block_kernel(%arg0: memref<16x32xf32, #tpu.memory_space<vmem>>, %arg1: memref<1x32xf32, #tpu.memory_space<vmem>>, %arg2: memref<1x32xf32, #tpu.memory_space<vmem>>, %arg3: memref<32x96xf32, #tpu.memory_space<vmem>>, %arg4: memref<1x96xf32, #tpu.memory_space<vmem>>, %arg5: memref<32x32xf32, #tpu.memory_space<vmem>>, %arg6: memref<1x32xf32, #tpu.memory_space<vmem>>, %arg7: memref<1x32xf32, #tpu.memory_space<vmem>>, %arg8: memref<1x32xf32, #tpu.memory_space<vmem>>, %arg9: memref<32x128xf32, #tpu.memory_space<vmem>>, %arg10: memref<1x128xf32, #tpu.memory_space<vmem>>, %arg11: memref<128x32xf32, #tpu.memory_space<vmem>>, %arg12: memref<1x32xf32, #tpu.memory_space<vmem>>, %arg13: memref<16x32xf32, #tpu.memory_space<vmem>>, %arg14: memref<16x32xf32, #tpu.memory_space<vmem>>, %arg15: memref<16x32xf32, #tpu.memory_space<vmem>>) attributes {dimension_semantics = [], scalar_prefetch = 0 : i64, scratch_operands = 0 : i64, tpu.core_type = #tpu.core_type<tc>} {
    %c0 = arith.constant 0 : index
    %c0_0 = arith.constant 0 : index
    %0 = vector.load %arg0[%c0, %c0_0] : memref<16x32xf32, #tpu.memory_space<vmem>>, vector<16x32xf32>
    %c0_1 = arith.constant 0 : index
    %c0_2 = arith.constant 0 : index
    %1 = vector.load %arg1[%c0_1, %c0_2] : memref<1x32xf32, #tpu.memory_space<vmem>>, vector<1x32xf32>
    %c0_3 = arith.constant 0 : index
    %c0_4 = arith.constant 0 : index
    %2 = vector.load %arg2[%c0_3, %c0_4] : memref<1x32xf32, #tpu.memory_space<vmem>>, vector<1x32xf32>
    %cst = arith.constant dense<0.000000e+00> : vector<16xf32>
    %3 = vector.multi_reduction <add>, %0, %cst [1] : vector<16x32xf32> to vector<16xf32>
    %4 = vector.shape_cast %3 : vector<16xf32> to vector<16x1xf32>
    %cst_5 = arith.constant 3.200000e+01 : f32
    %5 = vector.broadcast %cst_5 : f32 to vector<16x1xf32>
    %6 = arith.divf %4, %5 : vector<16x1xf32>
    %7 = vector.broadcast %6 : vector<16x1xf32> to vector<16x32xf32>
    %8 = arith.subf %0, %7 : vector<16x32xf32>
    %9 = arith.mulf %8, %8 : vector<16x32xf32>
    %cst_6 = arith.constant dense<0.000000e+00> : vector<16xf32>
    %10 = vector.multi_reduction <add>, %9, %cst_6 [1] : vector<16x32xf32> to vector<16xf32>
    %11 = vector.shape_cast %10 : vector<16xf32> to vector<16x1xf32>
    %cst_7 = arith.constant 3.200000e+01 : f32
    %12 = vector.broadcast %cst_7 : f32 to vector<16x1xf32>
    %13 = arith.divf %11, %12 : vector<16x1xf32>
    %14 = vector.broadcast %6 : vector<16x1xf32> to vector<16x32xf32>
    %15 = arith.subf %0, %14 : vector<16x32xf32>
    %cst_8 = arith.constant 9.99999974E-6 : f32
    %16 = vector.broadcast %cst_8 : f32 to vector<16x1xf32>
    %17 = arith.addf %13, %16 : vector<16x1xf32>
    %18 = math.rsqrt %17 : vector<16x1xf32>
    %19 = vector.broadcast %18 : vector<16x1xf32> to vector<16x32xf32>
    %20 = arith.mulf %15, %19 : vector<16x32xf32>
    %21 = vector.broadcast %1 : vector<1x32xf32> to vector<16x32xf32>
    %22 = arith.mulf %20, %21 : vector<16x32xf32>
    %23 = vector.broadcast %2 : vector<1x32xf32> to vector<16x32xf32>
    %24 = arith.addf %22, %23 : vector<16x32xf32>
    %c0_9 = arith.constant 0 : index
    %c0_10 = arith.constant 0 : index
    %25 = vector.load %arg3[%c0_9, %c0_10] : memref<32x96xf32, #tpu.memory_space<vmem>>, vector<32x96xf32>
    %cst_11 = arith.constant dense<0.000000e+00> : vector<16x96xf32>
    %26 = tpu.matmul %24, %25, %cst_11 {dimension_numbers = #tpu.dot_dimension_numbers<[1], [0], [0], [1], [0, 0, 1, 1], [], []>} : vector<16x32xf32>, vector<32x96xf32>, vector<16x96xf32> -> vector<16x96xf32>
    %c0_12 = arith.constant 0 : index
    %c0_13 = arith.constant 0 : index
    %27 = vector.load %arg4[%c0_12, %c0_13] : memref<1x96xf32, #tpu.memory_space<vmem>>, vector<1x96xf32>
    %28 = vector.broadcast %27 : vector<1x96xf32> to vector<16x96xf32>
    %29 = arith.addf %26, %28 : vector<16x96xf32>
    %30 = vector.extract_strided_slice %29 {offsets = [0, 0], sizes = [16, 32], strides = [1, 1]} : vector<16x96xf32> to vector<16x32xf32>
    %cst_14 = arith.constant 0.353553385 : f32
    %31 = vector.broadcast %cst_14 : f32 to vector<16x32xf32>
    %32 = arith.mulf %30, %31 : vector<16x32xf32>
    %33 = vector.extract_strided_slice %29 {offsets = [0, 32], sizes = [16, 32], strides = [1, 1]} : vector<16x96xf32> to vector<16x32xf32>
    %34 = vector.extract_strided_slice %29 {offsets = [0, 64], sizes = [16, 32], strides = [1, 1]} : vector<16x96xf32> to vector<16x32xf32>
    %35 = tpu.iota {dimensions = array<i32: 0>} : vector<16x16xi32>
    %36 = tpu.iota {dimensions = array<i32: 1>} : vector<16x16xi32>
    %c3_i32 = arith.constant 3 : i32
    %37 = vector.broadcast %c3_i32 : i32 to vector<16x16xi32>
    %38 = arith.shrsi %35, %37 : vector<16x16xi32>
    %c3_i32_15 = arith.constant 3 : i32
    %39 = vector.broadcast %c3_i32_15 : i32 to vector<16x16xi32>
    %40 = arith.shrsi %36, %39 : vector<16x16xi32>
    %41 = arith.cmpi eq, %38, %40 : vector<16x16xi32>
    %42 = arith.cmpi sge, %35, %36 : vector<16x16xi32>
    %43 = arith.andi %41, %42 : vector<16x16xi1>
    %c0_16 = arith.constant 0 : index
    %c0_17 = arith.constant 0 : index
    %44 = vector.load %arg6[%c0_16, %c0_17] : memref<1x32xf32, #tpu.memory_space<vmem>>, vector<1x32xf32>
    %45 = vector.extract_strided_slice %32 {offsets = [0, 0], sizes = [16, 8], strides = [1, 1]} : vector<16x32xf32> to vector<16x8xf32>
    %46 = vector.extract_strided_slice %33 {offsets = [0, 0], sizes = [16, 8], strides = [1, 1]} : vector<16x32xf32> to vector<16x8xf32>
    %47 = vector.extract_strided_slice %34 {offsets = [0, 0], sizes = [16, 8], strides = [1, 1]} : vector<16x32xf32> to vector<16x8xf32>
    %cst_18 = arith.constant dense<0.000000e+00> : vector<16x16xf32>
    %48 = tpu.matmul %45, %46, %cst_18 {dimension_numbers = #tpu.dot_dimension_numbers<[1], [1], [0], [0], [0, 0, 1, 0], [], []>} : vector<16x8xf32>, vector<16x8xf32>, vector<16x16xf32> -> vector<16x16xf32>
    %cst_19 = arith.constant -3.40282347E+38 : f32
    %49 = vector.broadcast %cst_19 : f32 to vector<16x16xf32>
    %50 = arith.select %43, %48, %49 : vector<16x16xi1>, vector<16x16xf32>
    %cst_20 = arith.constant dense<0xFF800000> : vector<16xf32>
    %51 = vector.multi_reduction <maximumf>, %50, %cst_20 [1] : vector<16x16xf32> to vector<16xf32>
    %52 = vector.shape_cast %51 : vector<16xf32> to vector<16x1xf32>
    %53 = vector.broadcast %52 : vector<16x1xf32> to vector<16x16xf32>
    %54 = arith.subf %50, %53 : vector<16x16xf32>
    %55 = math.exp %54 : vector<16x16xf32>
    %cst_21 = arith.constant dense<0.000000e+00> : vector<16xf32>
    %56 = vector.multi_reduction <add>, %55, %cst_21 [1] : vector<16x16xf32> to vector<16xf32>
    %57 = vector.shape_cast %56 : vector<16xf32> to vector<16x1xf32>
    %58 = tpu.reciprocal %57 : vector<16x1xf32> -> vector<16x1xf32>
    %59 = vector.broadcast %58 : vector<16x1xf32> to vector<16x16xf32>
    %60 = arith.mulf %55, %59 : vector<16x16xf32>
    %cst_22 = arith.constant dense<0.000000e+00> : vector<16x8xf32>
    %61 = tpu.matmul %60, %47, %cst_22 {dimension_numbers = #tpu.dot_dimension_numbers<[1], [0], [0], [1], [0, 0, 1, 1], [], []>} : vector<16x16xf32>, vector<16x8xf32>, vector<16x8xf32> -> vector<16x8xf32>
    %c0_23 = arith.constant 0 : index
    %c0_24 = arith.constant 0 : index
    %62 = vector.load %arg5[%c0_23, %c0_24] : memref<32x32xf32, #tpu.memory_space<vmem>>, vector<8x32xf32>
    %cst_25 = arith.constant dense<0.000000e+00> : vector<16x32xf32>
    %63 = tpu.matmul %61, %62, %cst_25 {dimension_numbers = #tpu.dot_dimension_numbers<[1], [0], [0], [1], [0, 0, 1, 1], [], []>} : vector<16x8xf32>, vector<8x32xf32>, vector<16x32xf32> -> vector<16x32xf32>
    %64 = vector.broadcast %44 : vector<1x32xf32> to vector<16x32xf32>
    %65 = arith.addf %64, %63 : vector<16x32xf32>
    %66 = vector.extract_strided_slice %32 {offsets = [0, 8], sizes = [16, 8], strides = [1, 1]} : vector<16x32xf32> to vector<16x8xf32>
    %67 = vector.extract_strided_slice %33 {offsets = [0, 8], sizes = [16, 8], strides = [1, 1]} : vector<16x32xf32> to vector<16x8xf32>
    %68 = vector.extract_strided_slice %34 {offsets = [0, 8], sizes = [16, 8], strides = [1, 1]} : vector<16x32xf32> to vector<16x8xf32>
    %cst_26 = arith.constant dense<0.000000e+00> : vector<16x16xf32>
    %69 = tpu.matmul %66, %67, %cst_26 {dimension_numbers = #tpu.dot_dimension_numbers<[1], [1], [0], [0], [0, 0, 1, 0], [], []>} : vector<16x8xf32>, vector<16x8xf32>, vector<16x16xf32> -> vector<16x16xf32>
    %cst_27 = arith.constant -3.40282347E+38 : f32
    %70 = vector.broadcast %cst_27 : f32 to vector<16x16xf32>
    %71 = arith.select %43, %69, %70 : vector<16x16xi1>, vector<16x16xf32>
    %cst_28 = arith.constant dense<0xFF800000> : vector<16xf32>
    %72 = vector.multi_reduction <maximumf>, %71, %cst_28 [1] : vector<16x16xf32> to vector<16xf32>
    %73 = vector.shape_cast %72 : vector<16xf32> to vector<16x1xf32>
    %74 = vector.broadcast %73 : vector<16x1xf32> to vector<16x16xf32>
    %75 = arith.subf %71, %74 : vector<16x16xf32>
    %76 = math.exp %75 : vector<16x16xf32>
    %cst_29 = arith.constant dense<0.000000e+00> : vector<16xf32>
    %77 = vector.multi_reduction <add>, %76, %cst_29 [1] : vector<16x16xf32> to vector<16xf32>
    %78 = vector.shape_cast %77 : vector<16xf32> to vector<16x1xf32>
    %79 = tpu.reciprocal %78 : vector<16x1xf32> -> vector<16x1xf32>
    %80 = vector.broadcast %79 : vector<16x1xf32> to vector<16x16xf32>
    %81 = arith.mulf %76, %80 : vector<16x16xf32>
    %cst_30 = arith.constant dense<0.000000e+00> : vector<16x8xf32>
    %82 = tpu.matmul %81, %68, %cst_30 {dimension_numbers = #tpu.dot_dimension_numbers<[1], [0], [0], [1], [0, 0, 1, 1], [], []>} : vector<16x16xf32>, vector<16x8xf32>, vector<16x8xf32> -> vector<16x8xf32>
    %c8 = arith.constant 8 : index
    %c0_31 = arith.constant 0 : index
    %83 = vector.load %arg5[%c8, %c0_31] : memref<32x32xf32, #tpu.memory_space<vmem>>, vector<8x32xf32>
    %cst_32 = arith.constant dense<0.000000e+00> : vector<16x32xf32>
    %84 = tpu.matmul %82, %83, %cst_32 {dimension_numbers = #tpu.dot_dimension_numbers<[1], [0], [0], [1], [0, 0, 1, 1], [], []>} : vector<16x8xf32>, vector<8x32xf32>, vector<16x32xf32> -> vector<16x32xf32>
    %85 = arith.addf %65, %84 : vector<16x32xf32>
    %86 = vector.extract_strided_slice %32 {offsets = [0, 16], sizes = [16, 8], strides = [1, 1]} : vector<16x32xf32> to vector<16x8xf32>
    %87 = vector.extract_strided_slice %33 {offsets = [0, 16], sizes = [16, 8], strides = [1, 1]} : vector<16x32xf32> to vector<16x8xf32>
    %88 = vector.extract_strided_slice %34 {offsets = [0, 16], sizes = [16, 8], strides = [1, 1]} : vector<16x32xf32> to vector<16x8xf32>
    %cst_33 = arith.constant dense<0.000000e+00> : vector<16x16xf32>
    %89 = tpu.matmul %86, %87, %cst_33 {dimension_numbers = #tpu.dot_dimension_numbers<[1], [1], [0], [0], [0, 0, 1, 0], [], []>} : vector<16x8xf32>, vector<16x8xf32>, vector<16x16xf32> -> vector<16x16xf32>
    %cst_34 = arith.constant -3.40282347E+38 : f32
    %90 = vector.broadcast %cst_34 : f32 to vector<16x16xf32>
    %91 = arith.select %43, %89, %90 : vector<16x16xi1>, vector<16x16xf32>
    %cst_35 = arith.constant dense<0xFF800000> : vector<16xf32>
    %92 = vector.multi_reduction <maximumf>, %91, %cst_35 [1] : vector<16x16xf32> to vector<16xf32>
    %93 = vector.shape_cast %92 : vector<16xf32> to vector<16x1xf32>
    %94 = vector.broadcast %93 : vector<16x1xf32> to vector<16x16xf32>
    %95 = arith.subf %91, %94 : vector<16x16xf32>
    %96 = math.exp %95 : vector<16x16xf32>
    %cst_36 = arith.constant dense<0.000000e+00> : vector<16xf32>
    %97 = vector.multi_reduction <add>, %96, %cst_36 [1] : vector<16x16xf32> to vector<16xf32>
    %98 = vector.shape_cast %97 : vector<16xf32> to vector<16x1xf32>
    %99 = tpu.reciprocal %98 : vector<16x1xf32> -> vector<16x1xf32>
    %100 = vector.broadcast %99 : vector<16x1xf32> to vector<16x16xf32>
    %101 = arith.mulf %96, %100 : vector<16x16xf32>
    %cst_37 = arith.constant dense<0.000000e+00> : vector<16x8xf32>
    %102 = tpu.matmul %101, %88, %cst_37 {dimension_numbers = #tpu.dot_dimension_numbers<[1], [0], [0], [1], [0, 0, 1, 1], [], []>} : vector<16x16xf32>, vector<16x8xf32>, vector<16x8xf32> -> vector<16x8xf32>
    %c16 = arith.constant 16 : index
    %c0_38 = arith.constant 0 : index
    %103 = vector.load %arg5[%c16, %c0_38] : memref<32x32xf32, #tpu.memory_space<vmem>>, vector<8x32xf32>
    %cst_39 = arith.constant dense<0.000000e+00> : vector<16x32xf32>
    %104 = tpu.matmul %102, %103, %cst_39 {dimension_numbers = #tpu.dot_dimension_numbers<[1], [0], [0], [1], [0, 0, 1, 1], [], []>} : vector<16x8xf32>, vector<8x32xf32>, vector<16x32xf32> -> vector<16x32xf32>
    %105 = arith.addf %85, %104 : vector<16x32xf32>
    %106 = vector.extract_strided_slice %32 {offsets = [0, 24], sizes = [16, 8], strides = [1, 1]} : vector<16x32xf32> to vector<16x8xf32>
    %107 = vector.extract_strided_slice %33 {offsets = [0, 24], sizes = [16, 8], strides = [1, 1]} : vector<16x32xf32> to vector<16x8xf32>
    %108 = vector.extract_strided_slice %34 {offsets = [0, 24], sizes = [16, 8], strides = [1, 1]} : vector<16x32xf32> to vector<16x8xf32>
    %cst_40 = arith.constant dense<0.000000e+00> : vector<16x16xf32>
    %109 = tpu.matmul %106, %107, %cst_40 {dimension_numbers = #tpu.dot_dimension_numbers<[1], [1], [0], [0], [0, 0, 1, 0], [], []>} : vector<16x8xf32>, vector<16x8xf32>, vector<16x16xf32> -> vector<16x16xf32>
    %cst_41 = arith.constant -3.40282347E+38 : f32
    %110 = vector.broadcast %cst_41 : f32 to vector<16x16xf32>
    %111 = arith.select %43, %109, %110 : vector<16x16xi1>, vector<16x16xf32>
    %cst_42 = arith.constant dense<0xFF800000> : vector<16xf32>
    %112 = vector.multi_reduction <maximumf>, %111, %cst_42 [1] : vector<16x16xf32> to vector<16xf32>
    %113 = vector.shape_cast %112 : vector<16xf32> to vector<16x1xf32>
    %114 = vector.broadcast %113 : vector<16x1xf32> to vector<16x16xf32>
    %115 = arith.subf %111, %114 : vector<16x16xf32>
    %116 = math.exp %115 : vector<16x16xf32>
    %cst_43 = arith.constant dense<0.000000e+00> : vector<16xf32>
    %117 = vector.multi_reduction <add>, %116, %cst_43 [1] : vector<16x16xf32> to vector<16xf32>
    %118 = vector.shape_cast %117 : vector<16xf32> to vector<16x1xf32>
    %119 = tpu.reciprocal %118 : vector<16x1xf32> -> vector<16x1xf32>
    %120 = vector.broadcast %119 : vector<16x1xf32> to vector<16x16xf32>
    %121 = arith.mulf %116, %120 : vector<16x16xf32>
    %cst_44 = arith.constant dense<0.000000e+00> : vector<16x8xf32>
    %122 = tpu.matmul %121, %108, %cst_44 {dimension_numbers = #tpu.dot_dimension_numbers<[1], [0], [0], [1], [0, 0, 1, 1], [], []>} : vector<16x16xf32>, vector<16x8xf32>, vector<16x8xf32> -> vector<16x8xf32>
    %c24 = arith.constant 24 : index
    %c0_45 = arith.constant 0 : index
    %123 = vector.load %arg5[%c24, %c0_45] : memref<32x32xf32, #tpu.memory_space<vmem>>, vector<8x32xf32>
    %cst_46 = arith.constant dense<0.000000e+00> : vector<16x32xf32>
    %124 = tpu.matmul %122, %123, %cst_46 {dimension_numbers = #tpu.dot_dimension_numbers<[1], [0], [0], [1], [0, 0, 1, 1], [], []>} : vector<16x8xf32>, vector<8x32xf32>, vector<16x32xf32> -> vector<16x32xf32>
    %125 = arith.addf %105, %124 : vector<16x32xf32>
    %126 = arith.addf %0, %125 : vector<16x32xf32>
    %c0_47 = arith.constant 0 : index
    %c0_48 = arith.constant 0 : index
    %127 = vector.load %arg7[%c0_47, %c0_48] : memref<1x32xf32, #tpu.memory_space<vmem>>, vector<1x32xf32>
    %c0_49 = arith.constant 0 : index
    %c0_50 = arith.constant 0 : index
    %128 = vector.load %arg8[%c0_49, %c0_50] : memref<1x32xf32, #tpu.memory_space<vmem>>, vector<1x32xf32>
    %cst_51 = arith.constant dense<0.000000e+00> : vector<16xf32>
    %129 = vector.multi_reduction <add>, %126, %cst_51 [1] : vector<16x32xf32> to vector<16xf32>
    %130 = vector.shape_cast %129 : vector<16xf32> to vector<16x1xf32>
    %cst_52 = arith.constant 3.200000e+01 : f32
    %131 = vector.broadcast %cst_52 : f32 to vector<16x1xf32>
    %132 = arith.divf %130, %131 : vector<16x1xf32>
    %133 = vector.broadcast %132 : vector<16x1xf32> to vector<16x32xf32>
    %134 = arith.subf %126, %133 : vector<16x32xf32>
    %135 = arith.mulf %134, %134 : vector<16x32xf32>
    %cst_53 = arith.constant dense<0.000000e+00> : vector<16xf32>
    %136 = vector.multi_reduction <add>, %135, %cst_53 [1] : vector<16x32xf32> to vector<16xf32>
    %137 = vector.shape_cast %136 : vector<16xf32> to vector<16x1xf32>
    %cst_54 = arith.constant 3.200000e+01 : f32
    %138 = vector.broadcast %cst_54 : f32 to vector<16x1xf32>
    %139 = arith.divf %137, %138 : vector<16x1xf32>
    %140 = vector.broadcast %132 : vector<16x1xf32> to vector<16x32xf32>
    %141 = arith.subf %126, %140 : vector<16x32xf32>
    %cst_55 = arith.constant 9.99999974E-6 : f32
    %142 = vector.broadcast %cst_55 : f32 to vector<16x1xf32>
    %143 = arith.addf %139, %142 : vector<16x1xf32>
    %144 = math.rsqrt %143 : vector<16x1xf32>
    %145 = vector.broadcast %144 : vector<16x1xf32> to vector<16x32xf32>
    %146 = arith.mulf %141, %145 : vector<16x32xf32>
    %147 = vector.broadcast %127 : vector<1x32xf32> to vector<16x32xf32>
    %148 = arith.mulf %146, %147 : vector<16x32xf32>
    %149 = vector.broadcast %128 : vector<1x32xf32> to vector<16x32xf32>
    %150 = arith.addf %148, %149 : vector<16x32xf32>
    %c0_56 = arith.constant 0 : index
    %c0_57 = arith.constant 0 : index
    %151 = vector.load %arg14[%c0_56, %c0_57] : memref<16x32xf32, #tpu.memory_space<vmem>>, vector<16x32xf32>
    tpu.vector_store %arg14[%c0_56, %c0_57], %150 {strides = array<i32>} : memref<16x32xf32, #tpu.memory_space<vmem>>, vector<16x32xf32>,
    %c0_58 = arith.constant 0 : index
    %c0_59 = arith.constant 0 : index
    %152 = vector.load %arg9[%c0_58, %c0_59] : memref<32x128xf32, #tpu.memory_space<vmem>>, vector<32x128xf32>
    %cst_60 = arith.constant dense<0.000000e+00> : vector<16x128xf32>
    %153 = tpu.matmul %150, %152, %cst_60 {dimension_numbers = #tpu.dot_dimension_numbers<[1], [0], [0], [1], [0, 0, 1, 1], [], []>} : vector<16x32xf32>, vector<32x128xf32>, vector<16x128xf32> -> vector<16x128xf32>
    %c0_61 = arith.constant 0 : index
    %c0_62 = arith.constant 0 : index
    %154 = vector.load %arg10[%c0_61, %c0_62] : memref<1x128xf32, #tpu.memory_space<vmem>>, vector<1x128xf32>
    %155 = vector.broadcast %154 : vector<1x128xf32> to vector<16x128xf32>
    %156 = arith.addf %153, %155 : vector<16x128xf32>
    %cst_63 = arith.constant 5.000000e-01 : f32
    %157 = vector.broadcast %cst_63 : f32 to vector<16x128xf32>
    %158 = arith.mulf %157, %156 : vector<16x128xf32>
    %159 = arith.mulf %156, %156 : vector<16x128xf32>
    %160 = arith.mulf %159, %156 : vector<16x128xf32>
    %cst_64 = arith.constant 4.471500e-02 : f32
    %161 = vector.broadcast %cst_64 : f32 to vector<16x128xf32>
    %162 = arith.mulf %161, %160 : vector<16x128xf32>
    %163 = arith.addf %156, %162 : vector<16x128xf32>
    %cst_65 = arith.constant 0.797884583 : f32
    %164 = vector.broadcast %cst_65 : f32 to vector<16x128xf32>
    %165 = arith.mulf %164, %163 : vector<16x128xf32>
    %166 = math.tanh %165 : vector<16x128xf32>
    %cst_66 = arith.constant 1.000000e+00 : f32
    %167 = vector.broadcast %cst_66 : f32 to vector<16x128xf32>
    %168 = arith.addf %167, %166 : vector<16x128xf32>
    %169 = arith.mulf %158, %168 : vector<16x128xf32>
    %c0_67 = arith.constant 0 : index
    %c0_68 = arith.constant 0 : index
    %170 = vector.load %arg11[%c0_67, %c0_68] : memref<128x32xf32, #tpu.memory_space<vmem>>, vector<128x32xf32>
    %cst_69 = arith.constant dense<0.000000e+00> : vector<16x32xf32>
    %171 = tpu.matmul %169, %170, %cst_69 {dimension_numbers = #tpu.dot_dimension_numbers<[1], [0], [0], [1], [0, 0, 1, 1], [], []>} : vector<16x128xf32>, vector<128x32xf32>, vector<16x32xf32> -> vector<16x32xf32>
    %c0_70 = arith.constant 0 : index
    %c0_71 = arith.constant 0 : index
    %172 = vector.load %arg12[%c0_70, %c0_71] : memref<1x32xf32, #tpu.memory_space<vmem>>, vector<1x32xf32>
    %173 = vector.broadcast %172 : vector<1x32xf32> to vector<16x32xf32>
    %174 = arith.addf %171, %173 : vector<16x32xf32>
    %c0_72 = arith.constant 0 : index
    %c0_73 = arith.constant 0 : index
    %175 = vector.load %arg15[%c0_72, %c0_73] : memref<16x32xf32, #tpu.memory_space<vmem>>, vector<16x32xf32>
    tpu.vector_store %arg15[%c0_72, %c0_73], %174 {strides = array<i32>} : memref<16x32xf32, #tpu.memory_space<vmem>>, vector<16x32xf32>,
    %176 = arith.addf %126, %174 : vector<16x32xf32>
    %c0_74 = arith.constant 0 : index
    %c0_75 = arith.constant 0 : index
    %177 = vector.load %arg13[%c0_74, %c0_75] : memref<16x32xf32, #tpu.memory_space<vmem>>, vector<16x32xf32>
    tpu.vector_store %arg13[%c0_74, %c0_75], %176 {strides = array<i32>} : memref<16x32xf32, #tpu.memory_space<vmem>>, vector<16x32xf32>,
    return
  }
}

</mosaic_0001>

<llo_original>
// kernel: tpu_custom_call.1
$region0: #{tpu_custom_call.1}
  #allocation0 [shape = 'u32[]', space=smem, size = 0x4, offset = 0x4, fixed_abs, tag = 'smem constant byte address 0x4 - core index']
  #allocation1 [shape = 'u32[144,128]{1,0:T(1,128)}', space=vmem, size = 0x12000, scoped, tag = 'internal scratch']
  %s0 = inlined_call_operand.vmem [shape: f32[16,32], index: 0, kind: input, shape index: {}]
  %s1 = inlined_call_operand.vmem [shape: f32[1,32], index: 1, kind: input, shape index: {}]
  %s2 = inlined_call_operand.vmem [shape: f32[1,32], index: 2, kind: input, shape index: {}]
  %s3 = inlined_call_operand.vmem [shape: f32[32,96], index: 3, kind: input, shape index: {}]
  %s4 = inlined_call_operand.vmem [shape: f32[1,96], index: 4, kind: input, shape index: {}]
  %s5 = inlined_call_operand.vmem [shape: f32[32,32], index: 5, kind: input, shape index: {}]
  %s6 = inlined_call_operand.vmem [shape: f32[1,32], index: 6, kind: input, shape index: {}]
  %s7 = inlined_call_operand.vmem [shape: f32[1,32], index: 7, kind: input, shape index: {}]
  %s8 = inlined_call_operand.vmem [shape: f32[1,32], index: 8, kind: input, shape index: {}]
  %s9 = inlined_call_operand.vmem [shape: f32[32,128], index: 9, kind: input, shape index: {}]
  %s10 = inlined_call_operand.vmem [shape: f32[1,128], index: 10, kind: input, shape index: {}]
  %s11 = inlined_call_operand.vmem [shape: f32[128,32], index: 11, kind: input, shape index: {}]
  %s12 = inlined_call_operand.vmem [shape: f32[1,32], index: 12, kind: input, shape index: {}]
  %s13 = inlined_call_operand.hbm [shape: f32[16,32], index: 13, kind: output, shape index: {0}]
  %s14 = inlined_call_operand.hbm [shape: f32[16,32], index: 14, kind: output, shape index: {1}]
  %s15 = inlined_call_operand.hbm [shape: f32[16,32], index: 15, kind: output, shape index: {2}]
  %16 = xla_tuple %s13, %s14, %s15
  %s17 = sld [smem:[#allocation0]]
  $region78: #{tpu_custom_call.1} parent=0
    _
  %s19 = ssub.s32 1, %s17
  %s20 = scalar_select 0, %s19, %s17
  $region1: #{tpu_custom_call.1} parent=0
    #allocation2 [shape = 'u8[8192]{0}', space=vmem, size = 0x2000, scoped, tag = 'output window, operand 0, single buffered']
    #allocation3 [shape = 's32[1]{0}', space=sflag, size = 0x4, scoped, tag = 'scoped memory for tpu_custom_call.1']
    #allocation4 [shape = 'u8[8192]{0}', space=vmem, size = 0x2000, scoped, tag = 'output window, operand 1, single buffered']
    #allocation5 [shape = 's32[1]{0}', space=sflag, size = 0x4, scoped, tag = 'scoped memory for tpu_custom_call.1']
    #allocation6 [shape = 'u8[8192]{0}', space=vmem, size = 0x2000, scoped, tag = 'output window, operand 2, single buffered']
    %21 = vsyncpa [#allocation3], 0
    %22 = vsyncpa [#allocation5], 0
    // Predicated region
    $region2: #{tpu_custom_call.1} parent=1 // pred_check
      _
    $region3: #{tpu_custom_call.1} parent=1 // pred_check_branch
      %24 = sbr.rel (0) target = $region5
    $region4: #{tpu_custom_call.1} parent=1 // pred_region
      _
    $region5: #{tpu_custom_call.1} parent=1 // pred_fallthru
      _
    // Predicated region
    $region6: #{tpu_custom_call.1} parent=1 // pred_check
      _
    $region7: #{tpu_custom_call.1} parent=1 // pred_check_branch
      %26 = sbr.rel (0) target = $region9
    $region8: #{tpu_custom_call.1} parent=1 // pred_region
      _
    $region9: #{tpu_custom_call.1} parent=1 // pred_fallthru
      _
    // Predicated region
    $region10: #{tpu_custom_call.1} parent=1 // pred_check
      _
    $region11: #{tpu_custom_call.1} parent=1 // pred_check_branch
      %28 = sbr.rel (0) target = $region13
    $region12: #{tpu_custom_call.1} parent=1 // pred_region
      _
    $region13: #{tpu_custom_call.1} parent=1 // pred_fallthru
      _
    // Predicated region
    $region14: #{tpu_custom_call.1} parent=1 // pred_check
      _
    $region15: #{tpu_custom_call.1} parent=1 // pred_check_branch
      %30 = sbr.rel (0) target = $region17
    $region16: #{tpu_custom_call.1} parent=1 // pred_region
      _
    $region17: #{tpu_custom_call.1} parent=1 // pred_fallthru
      _
    // Predicated region
    $region18: #{tpu_custom_call.1} parent=1 // pred_check
      _
    $region19: #{tpu_custom_call.1} parent=1 // pred_check_branch
      %32 = sbr.rel (0) target = $region21
    $region20: #{tpu_custom_call.1} parent=1 // pred_region
      _
    $region21: #{tpu_custom_call.1} parent=1 // pred_fallthru
      _
    // Predicated region
    $region22: #{tpu_custom_call.1} parent=1 // pred_check
      _
    $region23: #{tpu_custom_call.1} parent=1 // pred_check_branch
      %34 = sbr.rel (0) target = $region25
    $region24: #{tpu_custom_call.1} parent=1 // pred_region
      _
    $region25: #{tpu_custom_call.1} parent=1 // pred_fallthru
      _
    // Predicated region
    $region26: #{tpu_custom_call.1} parent=1 // pred_check
      _
    $region27: #{tpu_custom_call.1} parent=1 // pred_check_branch
      %36 = sbr.rel (0) target = $region29
    $region28: #{tpu_custom_call.1} parent=1 // pred_region
      _
    $region29: #{tpu_custom_call.1} parent=1 // pred_fallthru
      _
    // Predicated region
    $region30: #{tpu_custom_call.1} parent=1 // pred_check
      _
    $region31: #{tpu_custom_call.1} parent=1 // pred_check_branch
      %38 = sbr.rel (0) target = $region33
    $region32: #{tpu_custom_call.1} parent=1 // pred_region
      _
    $region33: #{tpu_custom_call.1} parent=1 // pred_fallthru
      _
    // Predicated region
    $region34: #{tpu_custom_call.1} parent=1 // pred_check
      _
    $region35: #{tpu_custom_call.1} parent=1 // pred_check_branch
      %40 = sbr.rel (0) target = $region37
    $region36: #{tpu_custom_call.1} parent=1 // pred_region
      _
    $region37: #{tpu_custom_call.1} parent=1 // pred_fallthru
      _
    // Predicated region
    $region38: #{tpu_custom_call.1} parent=1 // pred_check
      _
    $region39: #{tpu_custom_call.1} parent=1 // pred_check_branch
      %42 = sbr.rel (0) target = $region41
    $region40: #{tpu_custom_call.1} parent=1 // pred_region
      _
    $region41: #{tpu_custom_call.1} parent=1 // pred_fallthru
      _
    // Predicated region
    $region42: #{tpu_custom_call.1} parent=1 // pred_check
      _
    $region43: #{tpu_custom_call.1} parent=1 // pred_check_branch
      %44 = sbr.rel (0) target = $region45
    $region44: #{tpu_custom_call.1} parent=1 // pred_region
      _
    $region45: #{tpu_custom_call.1} parent=1 // pred_fallthru
      _
    // Predicated region
    $region46: #{tpu_custom_call.1} parent=1 // pred_check
      _
    $region47: #{tpu_custom_call.1} parent=1 // pred_check_branch
      %46 = sbr.rel (0) target = $region49
    $region48: #{tpu_custom_call.1} parent=1 // pred_region
      _
    $region49: #{tpu_custom_call.1} parent=1 // pred_fallthru
      _
    // Predicated region
    $region50: #{tpu_custom_call.1} parent=1 // pred_check
      _
    $region51: #{tpu_custom_call.1} parent=1 // pred_check_branch
      %48 = sbr.rel (0) target = $region53
    $region52: #{tpu_custom_call.1} parent=1 // pred_region
      _
    $region53: #{tpu_custom_call.1} parent=1 // pred_fallthru
      _
    %v49 = vld [vmem:[%s0] sm:$0xff]
    %v50 = vld [vmem:[%s0 + $0x8] sm:$0xff]
    %v51 = vld [vmem:[%s1] sm:$0x1]
    %v52 = vld [vmem:[%s2] sm:$0x1]
    %vm53 = vcmask 261120
    %v54 = vsel %vm53, %v49, 0.0
    %55 = vadd.xlane.f32.xlu0 %v54
    %v56 = vpop.xlane.xlu0 %55
    %v57 = vsel %vm53, %v50, 0.0
    %58 = vadd.xlane.f32.xlu0 %v57
    %v59 = vpop.xlane.xlu0 %58
    %v60 = vrcp.pop 32.0
    %v61 = vmul.f32 %v56, %v60
    %v62 = vmul.f32 %v59, %v60
    %v63 = vsub.f32 %v49, %v61
    %v64 = vsub.f32 %v50, %v62
    %v65 = vmul.f32 %v63, %v63
    %v66 = vmul.f32 %v64, %v64
    %v67 = vsel %vm53, %v65, 0.0
    %68 = vadd.xlane.f32.xlu0 %v67
    %v69 = vpop.xlane.xlu0 %68
    %v70 = vsel %vm53, %v66, 0.0
    %71 = vadd.xlane.f32.xlu0 %v70
    %v72 = vpop.xlane.xlu0 %71
    %v73 = vmul.f32 %v69, %v60
    %v74 = vmul.f32 %v72, %v60
    %v75 = vadd.f32 %v73, 1e-05
    %v76 = vadd.f32 %v74, 1e-05
    %v77 = vrsqrt.pop %v75
    %v78 = vrsqrt.pop %v76
    %v79 = vmul.f32 %v63, %v77
    %v80 = vmul.f32 %v64, %v78
    %v82 = vlaneseq
    %v83 = vshrl.u32 %v82, 7
    %v84 = vsub.s32 0, %v83
    %v85 = vrot.slane %v51, %v84
    %v87 = vmul.f32 %v79, %v85
    %v88 = vmul.f32 %v80, %v85
    %v90 = vlaneseq
    %v91 = vshrl.u32 %v90, 7
    %v92 = vsub.s32 0, %v91
    %v93 = vrot.slane %v52, %v92
    %v95 = vadd.f32 %v87, %v93
    %v96 = vadd.f32 %v88, %v93
    %v97 = vld [vmem:[%s3] sm:$0xff]
    %v98 = vld [vmem:[%s3 + $0x8] sm:$0xff]
    %v99 = vld [vmem:[%s3 + $0x10] sm:$0xff]
    %v100 = vld [vmem:[%s3 + $0x18] sm:$0xff]
    %v101 = vld [vmem:[%s4] sm:$0x1]
    %v103 = vlaneseq
    %v104 = vshrl.u32 %v103, 7
    %v105 = vsub.s32 0, %v104
    %v106 = vrot.slane %v101, %v105
    %v109 = vsel %vm53, %v95, 0
    %v112 = vsel %vm53, %v96, 0
    %114 = vmatprep.subr.mxu0 0.0
    %115 = vmatpush1.msra.mxu0 %v97
    %116 = vmatprep.subr.mxu0 0.0
    %117 = vmatpush1.msra.mxu0 %v98
    %118 = vmatprep.subr.mxu0 0.0
    %119 = vmatpush1.msra.mxu0 %v99
    %120 = vmatprep.subr.mxu0 0.0
    %121 = vmatpush1.msra.mxu0 %v100
    %122 = vmatprep.subr.mxu0 0.0
    %123 = vmatpush1.msra.mxu0 0.0
    %124 = vmatprep.subr.mxu0 0.0
    %125 = vmatpush1.msra.mxu0 0.0
    %126 = vmatprep.subr.mxu0 0.0
    %127 = vmatpush1.msra.mxu0 0.0
    %128 = vmatprep.subr.mxu0 0.0
    %129 = vmatpush1.msra.mxu0 0.0
    %130 = vmatprep.subr.mxu0 0.0
    %131 = vmatpush1.msra.mxu0 0.0
    %132 = vmatprep.subr.mxu0 0.0
    %133 = vmatpush1.msra.mxu0 0.0
    %134 = vmatprep.subr.mxu0 0.0
    %135 = vmatpush1.msra.mxu0 0.0
    %136 = vmatprep.subr.mxu0 0.0
    %137 = vmatpush1.msra.mxu0 0.0
    %138 = vmatprep.subr.mxu0 0.0
    %139 = vmatpush1.msra.mxu0 0.0
    %140 = vmatprep.subr.mxu0 0.0
    %141 = vmatpush1.msra.mxu0 0.0
    %142 = vmatprep.subr.mxu0 0.0
    %143 = vmatpush1.msra.mxu0 0.0
    %144 = vmatprep.subr.mxu0 0.0
    %145 = vmatpush1.msra.mxu0 0.0
    %146 = vmatprep.subr.mxu0 0.0
    %147 = vmatpush1.msra.mxu0 0.0
    %148 = vmatprep.subr.mxu0 0.0
    %149 = vmatpush1.msra.mxu0 0.0
    %150 = vmatprep.subr.mxu0 0.0
    %151 = vmatpush1.msra.mxu0 0.0
    %152 = vmatprep.subr.mxu0 0.0
    %153 = vmatpush1.msra.mxu0 0.0
    %154 = vmatprep.subr.mxu0 0.0
    %155 = vmatpush1.msra.mxu0 0.0
    %156 = vmatprep.subr.mxu0 0.0
    %157 = vmatpush1.msra.mxu0 0.0
    %158 = vmatprep.subr.mxu0 0.0
    %159 = vmatpush1.msra.mxu0 0.0
    %160 = vmatprep.subr.mxu0 0.0
    %161 = vmatpush1.msra.mxu0 0.0
    %162 = vmatprep.subr.mxu0 0.0
    %163 = vmatpush1.msra.mxu0 0.0
    %164 = vmatprep.subr.mxu0 0.0
    %165 = vmatpush1.msra.mxu0 0.0
    %166 = vmatprep.subr.mxu0 0.0
    %167 = vmatpush1.msra.mxu0 0.0
    %168 = vmatprep.subr.mxu0 0.0
    %169 = vmatpush1.msra.mxu0 0.0
    %170 = vmatprep.subr.mxu0 0.0
    %171 = vmatpush1.msra.mxu0 0.0
    %172 = vmatprep.subr.mxu0 0.0
    %173 = vmatpush1.msra.mxu0 0.0
    %174 = vmatprep.subr.mxu0 0.0
    %175 = vmatpush1.msra.mxu0 0.0
    %176 = vmatprep.subr.mxu0 0.0
    %177 = vmatpush1.msra.mxu0 0.0
    %178 = vmatprep.mubr.f32.mxu0 0.0
    %179 = vmatmul.mubr.f32.gmra.mrb[0].mxu0 %v109
    %v180 = vpop.f32.mrb[0].mxu0
    %v181 = vadd.f32 %v106, %v180
    %v182 = vpop.f32.mrb[0].mxu0
    %183 = vmatprep.mubr.f32.mxu0 0.0
    %184 = vmatmul.mubr.f32.gmra.mrb[0].mxu0 %v112
    %v185 = vpop.f32.mrb[0].mxu0
    %v186 = vadd.f32 %v106, %v185
    %v187 = vpop.f32.mrb[0].mxu0
    %188 = vdwg.mxu0
    %v189 = vmul.f32 %v181, 0.35355338
    %v190 = vmul.f32 %v186, 0.35355338
    %v191 = vlaneseq
    %v192 = vshrl.u32 %v191, 7
    %v193 = vadd.s32 %v192, 8
    %v194 = vlaneseq
    %v195 = vand.u32 %v194, 127
    %v196 = vshra.s32 %v192, 3
    %v197 = vshra.s32 %v193, 3
    %v198 = vshra.s32 %v195, 3
    %vm199 = vcmp.eq.s32.totalorder %v196, %v198
    %vm200 = vcmp.eq.s32.totalorder %v197, %v198
    %vm201 = vcmp.ge.s32.totalorder %v192, %v195
    %vm202 = vcmp.ge.s32.totalorder %v193, %v195
    %vm203 = vmand %vm199, %vm201
    %vm204 = vmand %vm200, %vm202
    %v205 = vld [vmem:[%s6] sm:$0x1]
    %208 = vrot.lane.b32.xlu0 %v181, 96
    %v209 = vpop.permute.xlu0 %208
    %210 = vrot.lane.b32.xlu0 %v186, 96
    %v211 = vpop.permute.xlu0 %210
    %vm212 = vcmask 64512
    %v214 = vsel %vm212, %v189, 0
    %v217 = vsel %vm212, %v190, 0
    %v219 = vsel %vm212, %v209, 0
    %v221 = vsel %vm212, %v211, 0
    %223 = vmatprep.subr.mxu0 0.0
    %224 = vmatpush1.xpose.msra.mxu0 %v219
    %225 = vmatprep.subr.mxu0 0.0
    %226 = vmatpush1.xpose.msra.mxu0 %v221
    %227 = vmatprep.subr.mxu0 0.0
    %228 = vmatpush1.xpose.msra.mxu0 0.0
    %229 = vmatprep.subr.mxu0 0.0
    %230 = vmatpush1.xpose.msra.mxu0 0.0
    %231 = vmatprep.subr.mxu0 0.0
    %232 = vmatpush1.xpose.msra.mxu0 0.0
    %233 = vmatprep.subr.mxu0 0.0
    %234 = vmatpush1.xpose.msra.mxu0 0.0
    %235 = vmatprep.subr.mxu0 0.0
    %236 = vmatpush1.xpose.msra.mxu0 0.0
    %237 = vmatprep.subr.mxu0 0.0
    %238 = vmatpush1.xpose.msra.mxu0 0.0
    %239 = vmatprep.subr.mxu0 0.0
    %240 = vmatpush1.xpose.msra.mxu0 0.0
    %241 = vmatprep.subr.mxu0 0.0
    %242 = vmatpush1.xpose.msra.mxu0 0.0
    %243 = vmatprep.subr.mxu0 0.0
    %244 = vmatpush1.xpose.msra.mxu0 0.0
    %245 = vmatprep.subr.mxu0 0.0
    %246 = vmatpush1.xpose.msra.mxu0 0.0
    %247 = vmatprep.subr.mxu0 0.0
    %248 = vmatpush1.xpose.msra.mxu0 0.0
    %249 = vmatprep.subr.mxu0 0.0
    %250 = vmatpush1.xpose.msra.mxu0 0.0
    %251 = vmatprep.subr.mxu0 0.0
    %252 = vmatpush1.xpose.msra.mxu0 0.0
    %253 = vmatprep.subr.mxu0 0.0
    %254 = vmatpush1.xpose.msra.mxu0 0.0
    %255 = vmatprep.subr.mxu0 0.0
    %256 = vmatpush1.xpose.msra.mxu0 0.0
    %257 = vmatprep.subr.mxu0 0.0
    %258 = vmatpush1.xpose.msra.mxu0 0.0
    %259 = vmatprep.subr.mxu0 0.0
    %260 = vmatpush1.xpose.msra.mxu0 0.0
    %261 = vmatprep.subr.mxu0 0.0
    %262 = vmatpush1.xpose.msra.mxu0 0.0
    %263 = vmatprep.subr.mxu0 0.0
    %264 = vmatpush1.xpose.msra.mxu0 0.0
    %265 = vmatprep.subr.mxu0 0.0
    %266 = vmatpush1.xpose.msra.mxu0 0.0
    %267 = vmatprep.subr.mxu0 0.0
    %268 = vmatpush1.xpose.msra.mxu0 0.0
    %269 = vmatprep.subr.mxu0 0.0
    %270 = vmatpush1.xpose.msra.mxu0 0.0
    %271 = vmatprep.subr.mxu0 0.0
    %272 = vmatpush1.xpose.msra.mxu0 0.0
    %273 = vmatprep.subr.mxu0 0.0
    %274 = vmatpush1.xpose.msra.mxu0 0.0
    %275 = vmatprep.subr.mxu0 0.0
    %276 = vmatpush1.xpose.msra.mxu0 0.0
    %277 = vmatprep.subr.mxu0 0.0
    %278 = vmatpush1.xpose.msra.mxu0 0.0
    %279 = vmatprep.subr.mxu0 0.0
    %280 = vmatpush1.xpose.msra.mxu0 0.0
    %281 = vmatprep.subr.mxu0 0.0
    %282 = vmatpush1.xpose.msra.mxu0 0.0
    %283 = vmatprep.subr.mxu0 0.0
    %284 = vmatpush1.xpose.msra.mxu0 0.0
    %285 = vmatprep.subr.mxu0 0.0
    %286 = vmatpush1.xpose.msra.mxu0 0.0
    %287 = vmatprep.mubr.f32.mxu0 0.0
    %288 = vmatmul.mubr.f32.gmra.mrb[0].mxu0 %v214
    %v289 = vpop.f32.mrb[0].mxu0
    %v290 = vadd.f32 0.0, %v289
    %v291 = vpop.f32.mrb[0].mxu0
    %292 = vmatprep.mubr.f32.mxu0 0.0
    %293 = vmatmul.mubr.f32.gmra.mrb[0].mxu0 %v217
    %v294 = vpop.f32.mrb[0].mxu0
    %v295 = vadd.f32 0.0, %v294
    %v296 = vpop.f32.mrb[0].mxu0
    %297 = vdwg.mxu0
    %v298 = vsel %vm203, %v290, -3.4028235e+38
    %v299 = vsel %vm204, %v295, -3.4028235e+38
    %vm300 = vcmask 130048
    %v301 = vsel %vm300, %v298, -inf
    %302 = vmax.xlane.f32.xlu0 %v301
    %v303 = vpop.xlane.xlu0 %302
    %v304 = vsel %vm300, %v299, -inf
    %305 = vmax.xlane.f32.xlu0 %v304
    %v306 = vpop.xlane.xlu0 %305
    %v307 = vsub.f32 %v298, %v303
    %v308 = vsub.f32 %v299, %v306
    %v309 = vmul.f32 %v307, 1.442695
    %v310 = vpow.pop %v309
    %v311 = vmul.f32 %v308, 1.442695
    %v312 = vpow.pop %v311
    %v313 = vsel %vm300, %v310, 0.0
    %314 = vadd.xlane.f32.xlu0 %v313
    %v315 = vpop.xlane.xlu0 %314
    %v316 = vsel %vm300, %v312, 0.0
    %317 = vadd.xlane.f32.xlu0 %v316
    %v318 = vpop.xlane.xlu0 %317
    %v319 = vrcp.pop %v315
    %v320 = vrcp.pop %v318
    %v321 = vmul.f32 %v310, %v319
    %v322 = vmul.f32 %v312, %v320
    %323 = vrot.lane.b32.xlu0 %v181, 64
    %v324 = vpop.permute.xlu0 %323
    %325 = vrot.lane.b32.xlu0 %v186, 64
    %v326 = vpop.permute.xlu0 %325
    %v330 = vsel %vm300, %v321, 0
    %v333 = vsel %vm300, %v322, 0
    %335 = vmatprep.subr.mxu0 0.0
    %336 = vmatpush1.msra.mxu0 %v324
    %337 = vmatprep.subr.mxu0 0.0
    %338 = vmatpush1.msra.mxu0 %v326
    %339 = vmatprep.subr.mxu0 0.0
    %340 = vmatpush1.msra.mxu0 0.0
    %341 = vmatprep.subr.mxu0 0.0
    %342 = vmatpush1.msra.mxu0 0.0
    %343 = vmatprep.subr.mxu0 0.0
    %344 = vmatpush1.msra.mxu0 0.0
    %345 = vmatprep.subr.mxu0 0.0
    %346 = vmatpush1.msra.mxu0 0.0
    %347 = vmatprep.subr.mxu0 0.0
    %348 = vmatpush1.msra.mxu0 0.0
    %349 = vmatprep.subr.mxu0 0.0
    %350 = vmatpush1.msra.mxu0 0.0
    %351 = vmatprep.subr.mxu0 0.0
    %352 = vmatpush1.msra.mxu0 0.0
    %353 = vmatprep.subr.mxu0 0.0
    %354 = vmatpush1.msra.mxu0 0.0
    %355 = vmatprep.subr.mxu0 0.0
    %356 = vmatpush1.msra.mxu0 0.0
    %357 = vmatprep.subr.mxu0 0.0
    %358 = vmatpush1.msra.mxu0 0.0
    %359 = vmatprep.subr.mxu0 0.0
    %360 = vmatpush1.msra.mxu0 0.0
    %361 = vmatprep.subr.mxu0 0.0
    %362 = vmatpush1.msra.mxu0 0.0
    %363 = vmatprep.subr.mxu0 0.0
    %364 = vmatpush1.msra.mxu0 0.0
    %365 = vmatprep.subr.mxu0 0.0
    %366 = vmatpush1.msra.mxu0 0.0
    %367 = vmatprep.subr.mxu0 0.0
    %368 = vmatpush1.msra.mxu0 0.0
    %369 = vmatprep.subr.mxu0 0.0
    %370 = vmatpush1.msra.mxu0 0.0
    %371 = vmatprep.subr.mxu0 0.0
    %372 = vmatpush1.msra.mxu0 0.0
    %373 = vmatprep.subr.mxu0 0.0
    %374 = vmatpush1.msra.mxu0 0.0
    %375 = vmatprep.subr.mxu0 0.0
    %376 = vmatpush1.msra.mxu0 0.0
    %377 = vmatprep.subr.mxu0 0.0
    %378 = vmatpush1.msra.mxu0 0.0
    %379 = vmatprep.subr.mxu0 0.0
    %380 = vmatpush1.msra.mxu0 0.0
    %381 = vmatprep.subr.mxu0 0.0
    %382 = vmatpush1.msra.mxu0 0.0
    %383 = vmatprep.subr.mxu0 0.0
    %384 = vmatpush1.msra.mxu0 0.0
    %385 = vmatprep.subr.mxu0 0.0
    %386 = vmatpush1.msra.mxu0 0.0
    %387 = vmatprep.subr.mxu0 0.0
    %388 = vmatpush1.msra.mxu0 0.0
    %389 = vmatprep.subr.mxu0 0.0
    %390 = vmatpush1.msra.mxu0 0.0
    %391 = vmatprep.subr.mxu0 0.0
    %392 = vmatpush1.msra.mxu0 0.0
    %393 = vmatprep.subr.mxu0 0.0
    %394 = vmatpush1.msra.mxu0 0.0
    %395 = vmatprep.subr.mxu0 0.0
    %396 = vmatpush1.msra.mxu0 0.0
    %397 = vmatprep.subr.mxu0 0.0
    %398 = vmatpush1.msra.mxu0 0.0
    %399 = vmatprep.mubr.f32.mxu0 0.0
    %400 = vmatmul.mubr.f32.gmra.mrb[0].mxu0 %v330
    %v401 = vpop.f32.mrb[0].mxu0
    %v402 = vadd.f32 0.0, %v401
    %v403 = vpop.f32.mrb[0].mxu0
    %404 = vmatprep.mubr.f32.mxu0 0.0
    %405 = vmatmul.mubr.f32.gmra.mrb[0].mxu0 %v333
    %v406 = vpop.f32.mrb[0].mxu0
    %v407 = vadd.f32 0.0, %v406
    %v408 = vpop.f32.mrb[0].mxu0
    %409 = vdwg.mxu0
    %v410 = vld [vmem:[%s5] sm:$0xff]
    %v412 = vsel %vm212, %v402, 0
    %v415 = vsel %vm212, %v407, 0
    %417 = vmatprep.subr.mxu0 0.0
    %418 = vmatpush1.msra.mxu0 %v410
    %419 = vmatprep.subr.mxu0 0.0
    %420 = vmatpush1.msra.mxu0 0.0
    %421 = vmatprep.subr.mxu0 0.0
    %422 = vmatpush1.msra.mxu0 0.0
    %423 = vmatprep.subr.mxu0 0.0
    %424 = vmatpush1.msra.mxu0 0.0
    %425 = vmatprep.subr.mxu0 0.0
    %426 = vmatpush1.msra.mxu0 0.0
    %427 = vmatprep.subr.mxu0 0.0
    %428 = vmatpush1.msra.mxu0 0.0
    %429 = vmatprep.subr.mxu0 0.0
    %430 = vmatpush1.msra.mxu0 0.0
    %431 = vmatprep.subr.mxu0 0.0
    %432 = vmatpush1.msra.mxu0 0.0
    %433 = vmatprep.subr.mxu0 0.0
    %434 = vmatpush1.msra.mxu0 0.0
    %435 = vmatprep.subr.mxu0 0.0
    %436 = vmatpush1.msra.mxu0 0.0
    %437 = vmatprep.subr.mxu0 0.0
    %438 = vmatpush1.msra.mxu0 0.0
    %439 = vmatprep.subr.mxu0 0.0
    %440 = vmatpush1.msra.mxu0 0.0
    %441 = vmatprep.subr.mxu0 0.0
    %442 = vmatpush1.msra.mxu0 0.0
    %443 = vmatprep.subr.mxu0 0.0
    %444 = vmatpush1.msra.mxu0 0.0
    %445 = vmatprep.subr.mxu0 0.0
    %446 = vmatpush1.msra.mxu0 0.0
    %447 = vmatprep.subr.mxu0 0.0
    %448 = vmatpush1.msra.mxu0 0.0
    %449 = vmatprep.subr.mxu0 0.0
    %450 = vmatpush1.msra.mxu0 0.0
    %451 = vmatprep.subr.mxu0 0.0
    %452 = vmatpush1.msra.mxu0 0.0
    %453 = vmatprep.subr.mxu0 0.0
    %454 = vmatpush1.msra.mxu0 0.0
    %455 = vmatprep.subr.mxu0 0.0
    %456 = vmatpush1.msra.mxu0 0.0
    %457 = vmatprep.subr.mxu0 0.0
    %458 = vmatpush1.msra.mxu0 0.0
    %459 = vmatprep.subr.mxu0 0.0
    %460 = vmatpush1.msra.mxu0 0.0
    %461 = vmatprep.subr.mxu0 0.0
    %462 = vmatpush1.msra.mxu0 0.0
    %463 = vmatprep.subr.mxu0 0.0
    %464 = vmatpush1.msra.mxu0 0.0
    %465 = vmatprep.subr.mxu0 0.0
    %466 = vmatpush1.msra.mxu0 0.0
    %467 = vmatprep.subr.mxu0 0.0
    %468 = vmatpush1.msra.mxu0 0.0
    %469 = vmatprep.subr.mxu0 0.0
    %470 = vmatpush1.msra.mxu0 0.0
    %471 = vmatprep.subr.mxu0 0.0
    %472 = vmatpush1.msra.mxu0 0.0
    %473 = vmatprep.subr.mxu0 0.0
    %474 = vmatpush1.msra.mxu0 0.0
    %475 = vmatprep.subr.mxu0 0.0
    %476 = vmatpush1.msra.mxu0 0.0
    %477 = vmatprep.subr.mxu0 0.0
    %478 = vmatpush1.msra.mxu0 0.0
    %479 = vmatprep.subr.mxu0 0.0
    %480 = vmatpush1.msra.mxu0 0.0
    %481 = vmatprep.mubr.f32.mxu0 0.0
    %482 = vmatmul.mubr.f32.gmra.mrb[0].mxu0 %v412
    %v483 = vpop.f32.mrb[0].mxu0
    %v484 = vadd.f32 0.0, %v483
    %v485 = vpop.f32.mrb[0].mxu0
    %486 = vmatprep.mubr.f32.mxu0 0.0
    %487 = vmatmul.mubr.f32.gmra.mrb[0].mxu0 %v415
    %v488 = vpop.f32.mrb[0].mxu0
    %v489 = vadd.f32 0.0, %v488
    %v490 = vpop.f32.mrb[0].mxu0
    %491 = vdwg.mxu0
    %v493 = vlaneseq
    %v494 = vshrl.u32 %v493, 7
    %v495 = vsub.s32 0, %v494
    %v496 = vrot.slane %v205, %v495
    %v498 = vadd.f32 %v496, %v484
    %v499 = vadd.f32 %v496, %v489
    %500 = vrot.lane.b32.xlu0 %v189, 120
    %v501 = vpop.permute.xlu0 %500
    %502 = vrot.lane.b32.xlu0 %v190, 120
    %v503 = vpop.permute.xlu0 %502
    %504 = vrot.lane.b32.xlu0 %v181, 88
    %v505 = vpop.permute.xlu0 %504
    %506 = vrot.lane.b32.xlu0 %v186, 88
    %v507 = vpop.permute.xlu0 %506
    %v508 = vsel %vm212, %v501, 0
    %v510 = vsel %vm212, %v503, 0
    %v512 = vsel %vm212, %v505, 0
    %v514 = vsel %vm212, %v507, 0
    %516 = vmatprep.subr.mxu0 0.0
    %517 = vmatpush1.xpose.msra.mxu0 %v512
    %518 = vmatprep.subr.mxu0 0.0
    %519 = vmatpush1.xpose.msra.mxu0 %v514
    %520 = vmatprep.subr.mxu0 0.0
    %521 = vmatpush1.xpose.msra.mxu0 0.0
    %522 = vmatprep.subr.mxu0 0.0
    %523 = vmatpush1.xpose.msra.mxu0 0.0
    %524 = vmatprep.subr.mxu0 0.0
    %525 = vmatpush1.xpose.msra.mxu0 0.0
    %526 = vmatprep.subr.mxu0 0.0
    %527 = vmatpush1.xpose.msra.mxu0 0.0
    %528 = vmatprep.subr.mxu0 0.0
    %529 = vmatpush1.xpose.msra.mxu0 0.0
    %530 = vmatprep.subr.mxu0 0.0
    %531 = vmatpush1.xpose.msra.mxu0 0.0
    %532 = vmatprep.subr.mxu0 0.0
    %533 = vmatpush1.xpose.msra.mxu0 0.0
    %534 = vmatprep.subr.mxu0 0.0
    %535 = vmatpush1.xpose.msra.mxu0 0.0
    %536 = vmatprep.subr.mxu0 0.0
    %537 = vmatpush1.xpose.msra.mxu0 0.0
    %538 = vmatprep.subr.mxu0 0.0
    %539 = vmatpush1.xpose.msra.mxu0 0.0
    %540 = vmatprep.subr.mxu0 0.0
    %541 = vmatpush1.xpose.msra.mxu0 0.0
    %542 = vmatprep.subr.mxu0 0.0
    %543 = vmatpush1.xpose.msra.mxu0 0.0
    %544 = vmatprep.subr.mxu0 0.0
    %545 = vmatpush1.xpose.msra.mxu0 0.0
    %546 = vmatprep.subr.mxu0 0.0
    %547 = vmatpush1.xpose.msra.mxu0 0.0
    %548 = vmatprep.subr.mxu0 0.0
    %549 = vmatpush1.xpose.msra.mxu0 0.0
    %550 = vmatprep.subr.mxu0 0.0
    %551 = vmatpush1.xpose.msra.mxu0 0.0
    %552 = vmatprep.subr.mxu0 0.0
    %553 = vmatpush1.xpose.msra.mxu0 0.0
    %554 = vmatprep.subr.mxu0 0.0
    %555 = vmatpush1.xpose.msra.mxu0 0.0
    %556 = vmatprep.subr.mxu0 0.0
    %557 = vmatpush1.xpose.msra.mxu0 0.0
    %558 = vmatprep.subr.mxu0 0.0
    %559 = vmatpush1.xpose.msra.mxu0 0.0
    %560 = vmatprep.subr.mxu0 0.0
    %561 = vmatpush1.xpose.msra.mxu0 0.0
    %562 = vmatprep.subr.mxu0 0.0
    %563 = vmatpush1.xpose.msra.mxu0 0.0
    %564 = vmatprep.subr.mxu0 0.0
    %565 = vmatpush1.xpose.msra.mxu0 0.0
    %566 = vmatprep.subr.mxu0 0.0
    %567 = vmatpush1.xpose.msra.mxu0 0.0
    %568 = vmatprep.subr.mxu0 0.0
    %569 = vmatpush1.xpose.msra.mxu0 0.0
    %570 = vmatprep.subr.mxu0 0.0
    %571 = vmatpush1.xpose.msra.mxu0 0.0
    %572 = vmatprep.subr.mxu0 0.0
    %573 = vmatpush1.xpose.msra.mxu0 0.0
    %574 = vmatprep.subr.mxu0 0.0
    %575 = vmatpush1.xpose.msra.mxu0 0.0
    %576 = vmatprep.subr.mxu0 0.0
    %577 = vmatpush1.xpose.msra.mxu0 0.0
    %578 = vmatprep.subr.mxu0 0.0
    %579 = vmatpush1.xpose.msra.mxu0 0.0
    %580 = vmatprep.mubr.f32.mxu0 0.0
    %581 = vmatmul.mubr.f32.gmra.mrb[0].mxu0 %v508
    %v582 = vpop.f32.mrb[0].mxu0
    %v583 = vadd.f32 0.0, %v582
    %v584 = vpop.f32.mrb[0].mxu0
    %585 = vmatprep.mubr.f32.mxu0 0.0
    %586 = vmatmul.mubr.f32.gmra.mrb[0].mxu0 %v510
    %v587 = vpop.f32.mrb[0].mxu0
    %v588 = vadd.f32 0.0, %v587
    %v589 = vpop.f32.mrb[0].mxu0
    %590 = vdwg.mxu0
    %v591 = vsel %vm203, %v583, -3.4028235e+38
    %v592 = vsel %vm204, %v588, -3.4028235e+38
    %v593 = vsel %vm300, %v591, -inf
    %594 = vmax.xlane.f32.xlu0 %v593
    %v595 = vpop.xlane.xlu0 %594
    %v596 = vsel %vm300, %v592, -inf
    %597 = vmax.xlane.f32.xlu0 %v596
    %v598 = vpop.xlane.xlu0 %597
    %v599 = vsub.f32 %v591, %v595
    %v600 = vsub.f32 %v592, %v598
    %v601 = vmul.f32 %v599, 1.442695
    %v602 = vpow.pop %v601
    %v603 = vmul.f32 %v600, 1.442695
    %v604 = vpow.pop %v603
    %v605 = vsel %vm300, %v602, 0.0
    %606 = vadd.xlane.f32.xlu0 %v605
    %v607 = vpop.xlane.xlu0 %606
    %v608 = vsel %vm300, %v604, 0.0
    %609 = vadd.xlane.f32.xlu0 %v608
    %v610 = vpop.xlane.xlu0 %609
    %v611 = vrcp.pop %v607
    %v612 = vrcp.pop %v610
    %v613 = vmul.f32 %v602, %v611
    %v614 = vmul.f32 %v604, %v612
    %615 = vrot.lane.b32.xlu0 %v181, 56
    %v616 = vpop.permute.xlu0 %615
    %617 = vrot.lane.b32.xlu0 %v186, 56
    %v618 = vpop.permute.xlu0 %617
    %v622 = vsel %vm300, %v613, 0
    %v625 = vsel %vm300, %v614, 0
    %627 = vmatprep.subr.mxu0 0.0
    %628 = vmatpush1.msra.mxu0 %v616
    %629 = vmatprep.subr.mxu0 0.0
    %630 = vmatpush1.msra.mxu0 %v618
    %631 = vmatprep.subr.mxu0 0.0
    %632 = vmatpush1.msra.mxu0 0.0
    %633 = vmatprep.subr.mxu0 0.0
    %634 = vmatpush1.msra.mxu0 0.0
    %635 = vmatprep.subr.mxu0 0.0
    %636 = vmatpush1.msra.mxu0 0.0
    %637 = vmatprep.subr.mxu0 0.0
    %638 = vmatpush1.msra.mxu0 0.0
    %639 = vmatprep.subr.mxu0 0.0
    %640 = vmatpush1.msra.mxu0 0.0
    %641 = vmatprep.subr.mxu0 0.0
    %642 = vmatpush1.msra.mxu0 0.0
    %643 = vmatprep.subr.mxu0 0.0
    %644 = vmatpush1.msra.mxu0 0.0
    %645 = vmatprep.subr.mxu0 0.0
    %646 = vmatpush1.msra.mxu0 0.0
    %647 = vmatprep.subr.mxu0 0.0
    %648 = vmatpush1.msra.mxu0 0.0
    %649 = vmatprep.subr.mxu0 0.0
    %650 = vmatpush1.msra.mxu0 0.0
    %651 = vmatprep.subr.mxu0 0.0
    %652 = vmatpush1.msra.mxu0 0.0
    %653 = vmatprep.subr.mxu0 0.0
    %654 = vmatpush1.msra.mxu0 0.0
    %655 = vmatprep.subr.mxu0 0.0
    %656 = vmatpush1.msra.mxu0 0.0
    %657 = vmatprep.subr.mxu0 0.0
    %658 = vmatpush1.msra.mxu0 0.0
    %659 = vmatprep.subr.mxu0 0.0
    %660 = vmatpush1.msra.mxu0 0.0
    %661 = vmatprep.subr.mxu0 0.0
    %662 = vmatpush1.msra.mxu0 0.0
    %663 = vmatprep.subr.mxu0 0.0
    %664 = vmatpush1.msra.mxu0 0.0
    %665 = vmatprep.subr.mxu0 0.0
    %666 = vmatpush1.msra.mxu0 0.0
    %667 = vmatprep.subr.mxu0 0.0
    %668 = vmatpush1.msra.mxu0 0.0
    %669 = vmatprep.subr.mxu0 0.0
    %670 = vmatpush1.msra.mxu0 0.0
    %671 = vmatprep.subr.mxu0 0.0
    %672 = vmatpush1.msra.mxu0 0.0
    %673 = vmatprep.subr.mxu0 0.0
    %674 = vmatpush1.msra.mxu0 0.0
    %675 = vmatprep.subr.mxu0 0.0
    %676 = vmatpush1.msra.mxu0 0.0
    %677 = vmatprep.subr.mxu0 0.0
    %678 = vmatpush1.msra.mxu0 0.0
    %679 = vmatprep.subr.mxu0 0.0
    %680 = vmatpush1.msra.mxu0 0.0
    %681 = vmatprep.subr.mxu0 0.0
    %682 = vmatpush1.msra.mxu0 0.0
    %683 = vmatprep.subr.mxu0 0.0
    %684 = vmatpush1.msra.mxu0 0.0
    %685 = vmatprep.subr.mxu0 0.0
    %686 = vmatpush1.msra.mxu0 0.0
    %687 = vmatprep.subr.mxu0 0.0
    %688 = vmatpush1.msra.mxu0 0.0
    %689 = vmatprep.subr.mxu0 0.0
    %690 = vmatpush1.msra.mxu0 0.0
    %691 = vmatprep.mubr.f32.mxu0 0.0
    %692 = vmatmul.mubr.f32.gmra.mrb[0].mxu0 %v622
    %v693 = vpop.f32.mrb[0].mxu0
    %v694 = vadd.f32 0.0, %v693
    %v695 = vpop.f32.mrb[0].mxu0
    %696 = vmatprep.mubr.f32.mxu0 0.0
    %697 = vmatmul.mubr.f32.gmra.mrb[0].mxu0 %v625
    %v698 = vpop.f32.mrb[0].mxu0
    %v699 = vadd.f32 0.0, %v698
    %v700 = vpop.f32.mrb[0].mxu0
    %701 = vdwg.mxu0
    %v702 = vld [vmem:[%s5 + $0x8] sm:$0xff]
    %v704 = vsel %vm212, %v694, 0
    %v707 = vsel %vm212, %v699, 0
    %709 = vmatprep.subr.mxu0 0.0
    %710 = vmatpush1.msra.mxu0 %v702
    %711 = vmatprep.subr.mxu0 0.0
    %712 = vmatpush1.msra.mxu0 0.0
    %713 = vmatprep.subr.mxu0 0.0
    %714 = vmatpush1.msra.mxu0 0.0
    %715 = vmatprep.subr.mxu0 0.0
    %716 = vmatpush1.msra.mxu0 0.0
    %717 = vmatprep.subr.mxu0 0.0
    %718 = vmatpush1.msra.mxu0 0.0
    %719 = vmatprep.subr.mxu0 0.0
    %720 = vmatpush1.msra.mxu0 0.0
    %721 = vmatprep.subr.mxu0 0.0
    %722 = vmatpush1.msra.mxu0 0.0
    %723 = vmatprep.subr.mxu0 0.0
    %724 = vmatpush1.msra.mxu0 0.0
    %725 = vmatprep.subr.mxu0 0.0
    %726 = vmatpush1.msra.mxu0 0.0
    %727 = vmatprep.subr.mxu0 0.0
    %728 = vmatpush1.msra.mxu0 0.0
    %729 = vmatprep.subr.mxu0 0.0
    %730 = vmatpush1.msra.mxu0 0.0
    %731 = vmatprep.subr.mxu0 0.0
    %732 = vmatpush1.msra.mxu0 0.0
    %733 = vmatprep.subr.mxu0 0.0
    %734 = vmatpush1.msra.mxu0 0.0
    %735 = vmatprep.subr.mxu0 0.0
    %736 = vmatpush1.msra.mxu0 0.0
    %737 = vmatprep.subr.mxu0 0.0
    %738 = vmatpush1.msra.mxu0 0.0
    %739 = vmatprep.subr.mxu0 0.0
    %740 = vmatpush1.msra.mxu0 0.0
    %741 = vmatprep.subr.mxu0 0.0
    %742 = vmatpush1.msra.mxu0 0.0
    %743 = vmatprep.subr.mxu0 0.0
    %744 = vmatpush1.msra.mxu0 0.0
    %745 = vmatprep.subr.mxu0 0.0
    %746 = vmatpush1.msra.mxu0 0.0
    %747 = vmatprep.subr.mxu0 0.0
    %748 = vmatpush1.msra.mxu0 0.0
    %749 = vmatprep.subr.mxu0 0.0
    %750 = vmatpush1.msra.mxu0 0.0
    %751 = vmatprep.subr.mxu0 0.0
    %752 = vmatpush1.msra.mxu0 0.0
    %753 = vmatprep.subr.mxu0 0.0
    %754 = vmatpush1.msra.mxu0 0.0
    %755 = vmatprep.subr.mxu0 0.0
    %756 = vmatpush1.msra.mxu0 0.0
    %757 = vmatprep.subr.mxu0 0.0
    %758 = vmatpush1.msra.mxu0 0.0
    %759 = vmatprep.subr.mxu0 0.0
    %760 = vmatpush1.msra.mxu0 0.0
    %761 = vmatprep.subr.mxu0 0.0
    %762 = vmatpush1.msra.mxu0 0.0
    %763 = vmatprep.subr.mxu0 0.0
    %764 = vmatpush1.msra.mxu0 0.0
    %765 = vmatprep.subr.mxu0 0.0
    %766 = vmatpush1.msra.mxu0 0.0
    %767 = vmatprep.subr.mxu0 0.0
    %768 = vmatpush1.msra.mxu0 0.0
    %769 = vmatprep.subr.mxu0 0.0
    %770 = vmatpush1.msra.mxu0 0.0
    %771 = vmatprep.subr.mxu0 0.0
    %772 = vmatpush1.msra.mxu0 0.0
    %773 = vmatprep.mubr.f32.mxu0 0.0
    %774 = vmatmul.mubr.f32.gmra.mrb[0].mxu0 %v704
    %v775 = vpop.f32.mrb[0].mxu0
    %v776 = vadd.f32 0.0, %v775
    %v777 = vpop.f32.mrb[0].mxu0
    %778 = vmatprep.mubr.f32.mxu0 0.0
    %779 = vmatmul.mubr.f32.gmra.mrb[0].mxu0 %v707
    %v780 = vpop.f32.mrb[0].mxu0
    %v781 = vadd.f32 0.0, %v780
    %v782 = vpop.f32.mrb[0].mxu0
    %783 = vdwg.mxu0
    %v784 = vadd.f32 %v498, %v776
    %v785 = vadd.f32 %v499, %v781
    %786 = vrot.lane.b32.xlu0 %v189, 112
    %v787 = vpop.permute.xlu0 %786
    %788 = vrot.lane.b32.xlu0 %v190, 112
    %v789 = vpop.permute.xlu0 %788
    %790 = vrot.lane.b32.xlu0 %v181, 80
    %v791 = vpop.permute.xlu0 %790
    %792 = vrot.lane.b32.xlu0 %v186, 80
    %v793 = vpop.permute.xlu0 %792
    %v794 = vsel %vm212, %v787, 0
    %v796 = vsel %vm212, %v789, 0
    %v798 = vsel %vm212, %v791, 0
    %v800 = vsel %vm212, %v793, 0
    %802 = vmatprep.subr.mxu0 0.0
    %803 = vmatpush1.xpose.msra.mxu0 %v798
    %804 = vmatprep.subr.mxu0 0.0
    %805 = vmatpush1.xpose.msra.mxu0 %v800
    %806 = vmatprep.subr.mxu0 0.0
    %807 = vmatpush1.xpose.msra.mxu0 0.0
    %808 = vmatprep.subr.mxu0 0.0
    %809 = vmatpush1.xpose.msra.mxu0 0.0
    %810 = vmatprep.subr.mxu0 0.0
    %811 = vmatpush1.xpose.msra.mxu0 0.0
    %812 = vmatprep.subr.mxu0 0.0
    %813 = vmatpush1.xpose.msra.mxu0 0.0
    %814 = vmatprep.subr.mxu0 0.0
    %815 = vmatpush1.xpose.msra.mxu0 0.0
    %816 = vmatprep.subr.mxu0 0.0
    %817 = vmatpush1.xpose.msra.mxu0 0.0
    %818 = vmatprep.subr.mxu0 0.0
    %819 = vmatpush1.xpose.msra.mxu0 0.0
    %820 = vmatprep.subr.mxu0 0.0
    %821 = vmatpush1.xpose.msra.mxu0 0.0
    %822 = vmatprep.subr.mxu0 0.0
    %823 = vmatpush1.xpose.msra.mxu0 0.0
    %824 = vmatprep.subr.mxu0 0.0
    %825 = vmatpush1.xpose.msra.mxu0 0.0
    %826 = vmatprep.subr.mxu0 0.0
    %827 = vmatpush1.xpose.msra.mxu0 0.0
    %828 = vmatprep.subr.mxu0 0.0
    %829 = vmatpush1.xpose.msra.mxu0 0.0
    %830 = vmatprep.subr.mxu0 0.0
    %831 = vmatpush1.xpose.msra.mxu0 0.0
    %832 = vmatprep.subr.mxu0 0.0
    %833 = vmatpush1.xpose.msra.mxu0 0.0
    %834 = vmatprep.subr.mxu0 0.0
    %835 = vmatpush1.xpose.msra.mxu0 0.0
    %836 = vmatprep.subr.mxu0 0.0
    %837 = vmatpush1.xpose.msra.mxu0 0.0
    %838 = vmatprep.subr.mxu0 0.0
    %839 = vmatpush1.xpose.msra.mxu0 0.0
    %840 = vmatprep.subr.mxu0 0.0
    %841 = vmatpush1.xpose.msra.mxu0 0.0
    %842 = vmatprep.subr.mxu0 0.0
    %843 = vmatpush1.xpose.msra.mxu0 0.0
    %844 = vmatprep.subr.mxu0 0.0
    %845 = vmatpush1.xpose.msra.mxu0 0.0
    %846 = vmatprep.subr.mxu0 0.0
    %847 = vmatpush1.xpose.msra.mxu0 0.0
    %848 = vmatprep.subr.mxu0 0.0
    %849 = vmatpush1.xpose.msra.mxu0 0.0
    %850 = vmatprep.subr.mxu0 0.0
    %851 = vmatpush1.xpose.msra.mxu0 0.0
    %852 = vmatprep.subr.mxu0 0.0
    %853 = vmatpush1.xpose.msra.mxu0 0.0
    %854 = vmatprep.subr.mxu0 0.0
    %855 = vmatpush1.xpose.msra.mxu0 0.0
    %856 = vmatprep.subr.mxu0 0.0
    %857 = vmatpush1.xpose.msra.mxu0 0.0
    %858 = vmatprep.subr.mxu0 0.0
    %859 = vmatpush1.xpose.msra.mxu0 0.0
    %860 = vmatprep.subr.mxu0 0.0
    %861 = vmatpush1.xpose.msra.mxu0 0.0
    %862 = vmatprep.subr.mxu0 0.0
    %863 = vmatpush1.xpose.msra.mxu0 0.0
    %864 = vmatprep.subr.mxu0 0.0
    %865 = vmatpush1.xpose.msra.mxu0 0.0
    %866 = vmatprep.mubr.f32.mxu0 0.0
    %867 = vmatmul.mubr.f32.gmra.mrb[0].mxu0 %v794
    %v868 = vpop.f32.mrb[0].mxu0
    %v869 = vadd.f32 0.0, %v868
    %v870 = vpop.f32.mrb[0].mxu0
    %871 = vmatprep.mubr.f32.mxu0 0.0
    %872 = vmatmul.mubr.f32.gmra.mrb[0].mxu0 %v796
    %v873 = vpop.f32.mrb[0].mxu0
    %v874 = vadd.f32 0.0, %v873
    %v875 = vpop.f32.mrb[0].mxu0
    %876 = vdwg.mxu0
    %v877 = vsel %vm203, %v869, -3.4028235e+38
    %v878 = vsel %vm204, %v874, -3.4028235e+38
    %v879 = vsel %vm300, %v877, -inf
    %880 = vmax.xlane.f32.xlu0 %v879
    %v881 = vpop.xlane.xlu0 %880
    %v882 = vsel %vm300, %v878, -inf
    %883 = vmax.xlane.f32.xlu0 %v882
    %v884 = vpop.xlane.xlu0 %883
    %v885 = vsub.f32 %v877, %v881
    %v886 = vsub.f32 %v878, %v884
    %v887 = vmul.f32 %v885, 1.442695
    %v888 = vpow.pop %v887
    %v889 = vmul.f32 %v886, 1.442695
    %v890 = vpow.pop %v889
    %v891 = vsel %vm300, %v888, 0.0
    %892 = vadd.xlane.f32.xlu0 %v891
    %v893 = vpop.xlane.xlu0 %892
    %v894 = vsel %vm300, %v890, 0.0
    %895 = vadd.xlane.f32.xlu0 %v894
    %v896 = vpop.xlane.xlu0 %895
    %v897 = vrcp.pop %v893
    %v898 = vrcp.pop %v896
    %v899 = vmul.f32 %v888, %v897
    %v900 = vmul.f32 %v890, %v898
    %901 = vrot.lane.b32.xlu0 %v181, 48
    %v902 = vpop.permute.xlu0 %901
    %903 = vrot.lane.b32.xlu0 %v186, 48
    %v904 = vpop.permute.xlu0 %903
    %v908 = vsel %vm300, %v899, 0
    %v911 = vsel %vm300, %v900, 0
    %913 = vmatprep.subr.mxu0 0.0
    %914 = vmatpush1.msra.mxu0 %v902
    %915 = vmatprep.subr.mxu0 0.0
    %916 = vmatpush1.msra.mxu0 %v904
    %917 = vmatprep.subr.mxu0 0.0
    %918 = vmatpush1.msra.mxu0 0.0
    %919 = vmatprep.subr.mxu0 0.0
    %920 = vmatpush1.msra.mxu0 0.0
    %921 = vmatprep.subr.mxu0 0.0
    %922 = vmatpush1.msra.mxu0 0.0
    %923 = vmatprep.subr.mxu0 0.0
    %924 = vmatpush1.msra.mxu0 0.0
    %925 = vmatprep.subr.mxu0 0.0
    %926 = vmatpush1.msra.mxu0 0.0
    %927 = vmatprep.subr.mxu0 0.0
    %928 = vmatpush1.msra.mxu0 0.0
    %929 = vmatprep.subr.mxu0 0.0
    %930 = vmatpush1.msra.mxu0 0.0
    %931 = vmatprep.subr.mxu0 0.0
    %932 = vmatpush1.msra.mxu0 0.0
    %933 = vmatprep.subr.mxu0 0.0
    %934 = vmatpush1.msra.mxu0 0.0
    %935 = vmatprep.subr.mxu0 0.0
    %936 = vmatpush1.msra.mxu0 0.0
    %937 = vmatprep.subr.mxu0 0.0
    %938 = vmatpush1.msra.mxu0 0.0
    %939 = vmatprep.subr.mxu0 0.0
    %940 = vmatpush1.msra.mxu0 0.0
    %941 = vmatprep.subr.mxu0 0.0
    %942 = vmatpush1.msra.mxu0 0.0
    %943 = vmatprep.subr.mxu0 0.0
    %944 = vmatpush1.msra.mxu0 0.0
    %945 = vmatprep.subr.mxu0 0.0
    %946 = vmatpush1.msra.mxu0 0.0
    %947 = vmatprep.subr.mxu0 0.0
    %948 = vmatpush1.msra.mxu0 0.0
    %949 = vmatprep.subr.mxu0 0.0
    %950 = vmatpush1.msra.mxu0 0.0
    %951 = vmatprep.subr.mxu0 0.0
    %952 = vmatpush1.msra.mxu0 0.0
    %953 = vmatprep.subr.mxu0 0.0
    %954 = vmatpush1.msra.mxu0 0.0
    %955 = vmatprep.subr.mxu0 0.0
    %956 = vmatpush1.msra.mxu0 0.0
    %957 = vmatprep.subr.mxu0 0.0
    %958 = vmatpush1.msra.mxu0 0.0
    %959 = vmatprep.subr.mxu0 0.0
    %960 = vmatpush1.msra.mxu0 0.0
    %961 = vmatprep.subr.mxu0 0.0
    %962 = vmatpush1.msra.mxu0 0.0
    %963 = vmatprep.subr.mxu0 0.0
    %964 = vmatpush1.msra.mxu0 0.0
    %965 = vmatprep.subr.mxu0 0.0
    %966 = vmatpush1.msra.mxu0 0.0
    %967 = vmatprep.subr.mxu0 0.0
    %968 = vmatpush1.msra.mxu0 0.0
    %969 = vmatprep.subr.mxu0 0.0
    %970 = vmatpush1.msra.mxu0 0.0
    %971 = vmatprep.subr.mxu0 0.0
    %972 = vmatpush1.msra.mxu0 0.0
    %973 = vmatprep.subr.mxu0 0.0
    %974 = vmatpush1.msra.mxu0 0.0
    %975 = vmatprep.subr.mxu0 0.0
    %976 = vmatpush1.msra.mxu0 0.0
    %977 = vmatprep.mubr.f32.mxu0 0.0
    %978 = vmatmul.mubr.f32.gmra.mrb[0].mxu0 %v908
    %v979 = vpop.f32.mrb[0].mxu0
    %v980 = vadd.f32 0.0, %v979
    %v981 = vpop.f32.mrb[0].mxu0
    %982 = vmatprep.mubr.f32.mxu0 0.0
    %983 = vmatmul.mubr.f32.gmra.mrb[0].mxu0 %v911
    %v984 = vpop.f32.mrb[0].mxu0
    %v985 = vadd.f32 0.0, %v984
    %v986 = vpop.f32.mrb[0].mxu0
    %987 = vdwg.mxu0
    %v988 = vld [vmem:[%s5 + $0x10] sm:$0xff]
    %v990 = vsel %vm212, %v980, 0
    %v993 = vsel %vm212, %v985, 0
    %995 = vmatprep.subr.mxu0 0.0
    %996 = vmatpush1.msra.mxu0 %v988
    %997 = vmatprep.subr.mxu0 0.0
    %998 = vmatpush1.msra.mxu0 0.0
    %999 = vmatprep.subr.mxu0 0.0
    %1000 = vmatpush1.msra.mxu0 0.0
    %1001 = vmatprep.subr.mxu0 0.0
    %1002 = vmatpush1.msra.mxu0 0.0
    %1003 = vmatprep.subr.mxu0 0.0
    %1004 = vmatpush1.msra.mxu0 0.0
    %1005 = vmatprep.subr.mxu0 0.0
    %1006 = vmatpush1.msra.mxu0 0.0
    %1007 = vmatprep.subr.mxu0 0.0
    %1008 = vmatpush1.msra.mxu0 0.0
    %1009 = vmatprep.subr.mxu0 0.0
    %1010 = vmatpush1.msra.mxu0 0.0
    %1011 = vmatprep.subr.mxu0 0.0
    %1012 = vmatpush1.msra.mxu0 0.0
    %1013 = vmatprep.subr.mxu0 0.0
    %1014 = vmatpush1.msra.mxu0 0.0
    %1015 = vmatprep.subr.mxu0 0.0
    %1016 = vmatpush1.msra.mxu0 0.0
    %1017 = vmatprep.subr.mxu0 0.0
    %1018 = vmatpush1.msra.mxu0 0.0
    %1019 = vmatprep.subr.mxu0 0.0
    %1020 = vmatpush1.msra.mxu0 0.0
    %1021 = vmatprep.subr.mxu0 0.0
    %1022 = vmatpush1.msra.mxu0 0.0
    %1023 = vmatprep.subr.mxu0 0.0
    %1024 = vmatpush1.msra.mxu0 0.0
    %1025 = vmatprep.subr.mxu0 0.0
    %1026 = vmatpush1.msra.mxu0 0.0
    %1027 = vmatprep.subr.mxu0 0.0
    %1028 = vmatpush1.msra.mxu0 0.0
    %1029 = vmatprep.subr.mxu0 0.0
    %1030 = vmatpush1.msra.mxu0 0.0
    %1031 = vmatprep.subr.mxu0 0.0
    %1032 = vmatpush1.msra.mxu0 0.0
    %1033 = vmatprep.subr.mxu0 0.0
    %1034 = vmatpush1.msra.mxu0 0.0
    %1035 = vmatprep.subr.mxu0 0.0
    %1036 = vmatpush1.msra.mxu0 0.0
    %1037 = vmatprep.subr.mxu0 0.0
    %1038 = vmatpush1.msra.mxu0 0.0
    %1039 = vmatprep.subr.mxu0 0.0
    %1040 = vmatpush1.msra.mxu0 0.0
    %1041 = vmatprep.subr.mxu0 0.0
    %1042 = vmatpush1.msra.mxu0 0.0
    %1043 = vmatprep.subr.mxu0 0.0
    %1044 = vmatpush1.msra.mxu0 0.0
    %1045 = vmatprep.subr.mxu0 0.0
    %1046 = vmatpush1.msra.mxu0 0.0
    %1047 = vmatprep.subr.mxu0 0.0
    %1048 = vmatpush1.msra.mxu0 0.0
    %1049 = vmatprep.subr.mxu0 0.0
    %1050 = vmatpush1.msra.mxu0 0.0
    %1051 = vmatprep.subr.mxu0 0.0
    %1052 = vmatpush1.msra.mxu0 0.0
    %1053 = vmatprep.subr.mxu0 0.0
    %1054 = vmatpush1.msra.mxu0 0.0
    %1055 = vmatprep.subr.mxu0 0.0
    %1056 = vmatpush1.msra.mxu0 0.0
    %1057 = vmatprep.subr.mxu0 0.0
    %1058 = vmatpush1.msra.mxu0 0.0
    %1059 = vmatprep.mubr.f32.mxu0 0.0
    %1060 = vmatmul.mubr.f32.gmra.mrb[0].mxu0 %v990
    %v1061 = vpop.f32.mrb[0].mxu0
    %v1062 = vadd.f32 0.0, %v1061
    %v1063 = vpop.f32.mrb[0].mxu0
    %1064 = vmatprep.mubr.f32.mxu0 0.0
    %1065 = vmatmul.mubr.f32.gmra.mrb[0].mxu0 %v993
    %v1066 = vpop.f32.mrb[0].mxu0
    %v1067 = vadd.f32 0.0, %v1066
    %v1068 = vpop.f32.mrb[0].mxu0
    %1069 = vdwg.mxu0
    %v1070 = vadd.f32 %v784, %v1062
    %v1071 = vadd.f32 %v785, %v1067
    %1072 = vrot.lane.b32.xlu0 %v189, 104
    %v1073 = vpop.permute.xlu0 %1072
    %1074 = vrot.lane.b32.xlu0 %v190, 104
    %v1075 = vpop.permute.xlu0 %1074
    %1076 = vrot.lane.b32.xlu0 %v181, 72
    %v1077 = vpop.permute.xlu0 %1076
    %1078 = vrot.lane.b32.xlu0 %v186, 72
    %v1079 = vpop.permute.xlu0 %1078
    %v1080 = vsel %vm212, %v1073, 0
    %v1082 = vsel %vm212, %v1075, 0
    %v1084 = vsel %vm212, %v1077, 0
    %v1086 = vsel %vm212, %v1079, 0
    %1088 = vmatprep.subr.mxu0 0.0
    %1089 = vmatpush1.xpose.msra.mxu0 %v1084
    %1090 = vmatprep.subr.mxu0 0.0
    %1091 = vmatpush1.xpose.msra.mxu0 %v1086
    %1092 = vmatprep.subr.mxu0 0.0
    %1093 = vmatpush1.xpose.msra.mxu0 0.0
    %1094 = vmatprep.subr.mxu0 0.0
    %1095 = vmatpush1.xpose.msra.mxu0 0.0
    %1096 = vmatprep.subr.mxu0 0.0
    %1097 = vmatpush1.xpose.msra.mxu0 0.0
    %1098 = vmatprep.subr.mxu0 0.0
    %1099 = vmatpush1.xpose.msra.mxu0 0.0
    %1100 = vmatprep.subr.mxu0 0.0
    %1101 = vmatpush1.xpose.msra.mxu0 0.0
    %1102 = vmatprep.subr.mxu0 0.0
    %1103 = vmatpush1.xpose.msra.mxu0 0.0
    %1104 = vmatprep.subr.mxu0 0.0
    %1105 = vmatpush1.xpose.msra.mxu0 0.0
    %1106 = vmatprep.subr.mxu0 0.0
    %1107 = vmatpush1.xpose.msra.mxu0 0.0
    %1108 = vmatprep.subr.mxu0 0.0
    %1109 = vmatpush1.xpose.msra.mxu0 0.0
    %1110 = vmatprep.subr.mxu0 0.0
    %1111 = vmatpush1.xpose.msra.mxu0 0.0
    %1112 = vmatprep.subr.mxu0 0.0
    %1113 = vmatpush1.xpose.msra.mxu0 0.0
    %1114 = vmatprep.subr.mxu0 0.0
    %1115 = vmatpush1.xpose.msra.mxu0 0.0
    %1116 = vmatprep.subr.mxu0 0.0
    %1117 = vmatpush1.xpose.msra.mxu0 0.0
    %1118 = vmatprep.subr.mxu0 0.0
    %1119 = vmatpush1.xpose.msra.mxu0 0.0
    %1120 = vmatprep.subr.mxu0 0.0
    %1121 = vmatpush1.xpose.msra.mxu0 0.0
    %1122 = vmatprep.subr.mxu0 0.0
    %1123 = vmatpush1.xpose.msra.mxu0 0.0
    %1124 = vmatprep.subr.mxu0 0.0
    %1125 = vmatpush1.xpose.msra.mxu0 0.0
    %1126 = vmatprep.subr.mxu0 0.0
    %1127 = vmatpush1.xpose.msra.mxu0 0.0
    %1128 = vmatprep.subr.mxu0 0.0
    %1129 = vmatpush1.xpose.msra.mxu0 0.0
    %1130 = vmatprep.subr.mxu0 0.0
    %1131 = vmatpush1.xpose.msra.mxu0 0.0
    %1132 = vmatprep.subr.mxu0 0.0
    %1133 = vmatpush1.xpose.msra.mxu0 0.0
    %1134 = vmatprep.subr.mxu0 0.0
    %1135 = vmatpush1.xpose.msra.mxu0 0.0
    %1136 = vmatprep.subr.mxu0 0.0
    %1137 = vmatpush1.xpose.msra.mxu0 0.0
    %1138 = vmatprep.subr.mxu0 0.0
    %1139 = vmatpush1.xpose.msra.mxu0 0.0
    %1140 = vmatprep.subr.mxu0 0.0
    %1141 = vmatpush1.xpose.msra.mxu0 0.0
    %1142 = vmatprep.subr.mxu0 0.0
    %1143 = vmatpush1.xpose.msra.mxu0 0.0
    %1144 = vmatprep.subr.mxu0 0.0
    %1145 = vmatpush1.xpose.msra.mxu0 0.0
    %1146 = vmatprep.subr.mxu0 0.0
    %1147 = vmatpush1.xpose.msra.mxu0 0.0
    %1148 = vmatprep.subr.mxu0 0.0
    %1149 = vmatpush1.xpose.msra.mxu0 0.0
    %1150 = vmatprep.subr.mxu0 0.0
    %1151 = vmatpush1.xpose.msra.mxu0 0.0
    %1152 = vmatprep.mubr.f32.mxu0 0.0
    %1153 = vmatmul.mubr.f32.gmra.mrb[0].mxu0 %v1080
    %v1154 = vpop.f32.mrb[0].mxu0
    %v1155 = vadd.f32 0.0, %v1154
    %v1156 = vpop.f32.mrb[0].mxu0
    %1157 = vmatprep.mubr.f32.mxu0 0.0
    %1158 = vmatmul.mubr.f32.gmra.mrb[0].mxu0 %v1082
    %v1159 = vpop.f32.mrb[0].mxu0
    %v1160 = vadd.f32 0.0, %v1159
    %v1161 = vpop.f32.mrb[0].mxu0
    %1162 = vdwg.mxu0
    %v1163 = vsel %vm203, %v1155, -3.4028235e+38
    %v1164 = vsel %vm204, %v1160, -3.4028235e+38
    %v1165 = vsel %vm300, %v1163, -inf
    %1166 = vmax.xlane.f32.xlu0 %v1165
    %v1167 = vpop.xlane.xlu0 %1166
    %v1168 = vsel %vm300, %v1164, -inf
    %1169 = vmax.xlane.f32.xlu0 %v1168
    %v1170 = vpop.xlane.xlu0 %1169
    %v1171 = vsub.f32 %v1163, %v1167
    %v1172 = vsub.f32 %v1164, %v1170
    %v1173 = vmul.f32 %v1171, 1.442695
    %v1174 = vpow.pop %v1173
    %v1175 = vmul.f32 %v1172, 1.442695
    %v1176 = vpow.pop %v1175
    %v1177 = vsel %vm300, %v1174, 0.0
    %1178 = vadd.xlane.f32.xlu0 %v1177
    %v1179 = vpop.xlane.xlu0 %1178
    %v1180 = vsel %vm300, %v1176, 0.0
    %1181 = vadd.xlane.f32.xlu0 %v1180
    %v1182 = vpop.xlane.xlu0 %1181
    %v1183 = vrcp.pop %v1179
    %v1184 = vrcp.pop %v1182
    %v1185 = vmul.f32 %v1174, %v1183
    %v1186 = vmul.f32 %v1176, %v1184
    %1187 = vrot.lane.b32.xlu0 %v181, 40
    %v1188 = vpop.permute.xlu0 %1187
    %1189 = vrot.lane.b32.xlu0 %v186, 40
    %v1190 = vpop.permute.xlu0 %1189
    %v1194 = vsel %vm300, %v1185, 0
    %v1197 = vsel %vm300, %v1186, 0
    %1199 = vmatprep.subr.mxu0 0.0
    %1200 = vmatpush1.msra.mxu0 %v1188
    %1201 = vmatprep.subr.mxu0 0.0
    %1202 = vmatpush1.msra.mxu0 %v1190
    %1203 = vmatprep.subr.mxu0 0.0
    %1204 = vmatpush1.msra.mxu0 0.0
    %1205 = vmatprep.subr.mxu0 0.0
    %1206 = vmatpush1.msra.mxu0 0.0
    %1207 = vmatprep.subr.mxu0 0.0
    %1208 = vmatpush1.msra.mxu0 0.0
    %1209 = vmatprep.subr.mxu0 0.0
    %1210 = vmatpush1.msra.mxu0 0.0
    %1211 = vmatprep.subr.mxu0 0.0
    %1212 = vmatpush1.msra.mxu0 0.0
    %1213 = vmatprep.subr.mxu0 0.0
    %1214 = vmatpush1.msra.mxu0 0.0
    %1215 = vmatprep.subr.mxu0 0.0
    %1216 = vmatpush1.msra.mxu0 0.0
    %1217 = vmatprep.subr.mxu0 0.0
    %1218 = vmatpush1.msra.mxu0 0.0
    %1219 = vmatprep.subr.mxu0 0.0
    %1220 = vmatpush1.msra.mxu0 0.0
    %1221 = vmatprep.subr.mxu0 0.0
    %1222 = vmatpush1.msra.mxu0 0.0
    %1223 = vmatprep.subr.mxu0 0.0
    %1224 = vmatpush1.msra.mxu0 0.0
    %1225 = vmatprep.subr.mxu0 0.0
    %1226 = vmatpush1.msra.mxu0 0.0
    %1227 = vmatprep.subr.mxu0 0.0
    %1228 = vmatpush1.msra.mxu0 0.0
    %1229 = vmatprep.subr.mxu0 0.0
    %1230 = vmatpush1.msra.mxu0 0.0
    %1231 = vmatprep.subr.mxu0 0.0
    %1232 = vmatpush1.msra.mxu0 0.0
    %1233 = vmatprep.subr.mxu0 0.0
    %1234 = vmatpush1.msra.mxu0 0.0
    %1235 = vmatprep.subr.mxu0 0.0
    %1236 = vmatpush1.msra.mxu0 0.0
    %1237 = vmatprep.subr.mxu0 0.0
    %1238 = vmatpush1.msra.mxu0 0.0
    %1239 = vmatprep.subr.mxu0 0.0
    %1240 = vmatpush1.msra.mxu0 0.0
    %1241 = vmatprep.subr.mxu0 0.0
    %1242 = vmatpush1.msra.mxu0 0.0
    %1243 = vmatprep.subr.mxu0 0.0
    %1244 = vmatpush1.msra.mxu0 0.0
    %1245 = vmatprep.subr.mxu0 0.0
    %1246 = vmatpush1.msra.mxu0 0.0
    %1247 = vmatprep.subr.mxu0 0.0
    %1248 = vmatpush1.msra.mxu0 0.0
    %1249 = vmatprep.subr.mxu0 0.0
    %1250 = vmatpush1.msra.mxu0 0.0
    %1251 = vmatprep.subr.mxu0 0.0
    %1252 = vmatpush1.msra.mxu0 0.0
    %1253 = vmatprep.subr.mxu0 0.0
    %1254 = vmatpush1.msra.mxu0 0.0
    %1255 = vmatprep.subr.mxu0 0.0
    %1256 = vmatpush1.msra.mxu0 0.0
    %1257 = vmatprep.subr.mxu0 0.0
    %1258 = vmatpush1.msra.mxu0 0.0
    %1259 = vmatprep.subr.mxu0 0.0
    %1260 = vmatpush1.msra.mxu0 0.0
    %1261 = vmatprep.subr.mxu0 0.0
    %1262 = vmatpush1.msra.mxu0 0.0
    %1263 = vmatprep.mubr.f32.mxu0 0.0
    %1264 = vmatmul.mubr.f32.gmra.mrb[0].mxu0 %v1194
    %v1265 = vpop.f32.mrb[0].mxu0
    %v1266 = vadd.f32 0.0, %v1265
    %v1267 = vpop.f32.mrb[0].mxu0
    %1268 = vmatprep.mubr.f32.mxu0 0.0
    %1269 = vmatmul.mubr.f32.gmra.mrb[0].mxu0 %v1197
    %v1270 = vpop.f32.mrb[0].mxu0
    %v1271 = vadd.f32 0.0, %v1270
    %v1272 = vpop.f32.mrb[0].mxu0
    %1273 = vdwg.mxu0
    %v1274 = vld [vmem:[%s5 + $0x18] sm:$0xff]
    %v1276 = vsel %vm212, %v1266, 0
    %v1279 = vsel %vm212, %v1271, 0
    %1281 = vmatprep.subr.mxu0 0.0
    %1282 = vmatpush1.msra.mxu0 %v1274
    %1283 = vmatprep.subr.mxu0 0.0
    %1284 = vmatpush1.msra.mxu0 0.0
    %1285 = vmatprep.subr.mxu0 0.0
    %1286 = vmatpush1.msra.mxu0 0.0
    %1287 = vmatprep.subr.mxu0 0.0
    %1288 = vmatpush1.msra.mxu0 0.0
    %1289 = vmatprep.subr.mxu0 0.0
    %1290 = vmatpush1.msra.mxu0 0.0
    %1291 = vmatprep.subr.mxu0 0.0
    %1292 = vmatpush1.msra.mxu0 0.0
    %1293 = vmatprep.subr.mxu0 0.0
    %1294 = vmatpush1.msra.mxu0 0.0
    %1295 = vmatprep.subr.mxu0 0.0
    %1296 = vmatpush1.msra.mxu0 0.0
    %1297 = vmatprep.subr.mxu0 0.0
    %1298 = vmatpush1.msra.mxu0 0.0
    %1299 = vmatprep.subr.mxu0 0.0
    %1300 = vmatpush1.msra.mxu0 0.0
    %1301 = vmatprep.subr.mxu0 0.0
    %1302 = vmatpush1.msra.mxu0 0.0
    %1303 = vmatprep.subr.mxu0 0.0
    %1304 = vmatpush1.msra.mxu0 0.0
    %1305 = vmatprep.subr.mxu0 0.0
    %1306 = vmatpush1.msra.mxu0 0.0
    %1307 = vmatprep.subr.mxu0 0.0
    %1308 = vmatpush1.msra.mxu0 0.0
    %1309 = vmatprep.subr.mxu0 0.0
    %1310 = vmatpush1.msra.mxu0 0.0
    %1311 = vmatprep.subr.mxu0 0.0
    %1312 = vmatpush1.msra.mxu0 0.0
    %1313 = vmatprep.subr.mxu0 0.0
    %1314 = vmatpush1.msra.mxu0 0.0
    %1315 = vmatprep.subr.mxu0 0.0
    %1316 = vmatpush1.msra.mxu0 0.0
    %1317 = vmatprep.subr.mxu0 0.0
    %1318 = vmatpush1.msra.mxu0 0.0
    %1319 = vmatprep.subr.mxu0 0.0
    %1320 = vmatpush1.msra.mxu0 0.0
    %1321 = vmatprep.subr.mxu0 0.0
    %1322 = vmatpush1.msra.mxu0 0.0
    %1323 = vmatprep.subr.mxu0 0.0
    %1324 = vmatpush1.msra.mxu0 0.0
    %1325 = vmatprep.subr.mxu0 0.0
    %1326 = vmatpush1.msra.mxu0 0.0
    %1327 = vmatprep.subr.mxu0 0.0
    %1328 = vmatpush1.msra.mxu0 0.0
    %1329 = vmatprep.subr.mxu0 0.0
    %1330 = vmatpush1.msra.mxu0 0.0
    %1331 = vmatprep.subr.mxu0 0.0
    %1332 = vmatpush1.msra.mxu0 0.0
    %1333 = vmatprep.subr.mxu0 0.0
    %1334 = vmatpush1.msra.mxu0 0.0
    %1335 = vmatprep.subr.mxu0 0.0
    %1336 = vmatpush1.msra.mxu0 0.0
    %1337 = vmatprep.subr.mxu0 0.0
    %1338 = vmatpush1.msra.mxu0 0.0
    %1339 = vmatprep.subr.mxu0 0.0
    %1340 = vmatpush1.msra.mxu0 0.0
    %1341 = vmatprep.subr.mxu0 0.0
    %1342 = vmatpush1.msra.mxu0 0.0
    %1343 = vmatprep.subr.mxu0 0.0
    %1344 = vmatpush1.msra.mxu0 0.0
    %1345 = vmatprep.mubr.f32.mxu0 0.0
    %1346 = vmatmul.mubr.f32.gmra.mrb[0].mxu0 %v1276
    %v1347 = vpop.f32.mrb[0].mxu0
    %v1348 = vadd.f32 0.0, %v1347
    %v1349 = vpop.f32.mrb[0].mxu0
    %1350 = vmatprep.mubr.f32.mxu0 0.0
    %1351 = vmatmul.mubr.f32.gmra.mrb[0].mxu0 %v1279
    %v1352 = vpop.f32.mrb[0].mxu0
    %v1353 = vadd.f32 0.0, %v1352
    %v1354 = vpop.f32.mrb[0].mxu0
    %1355 = vdwg.mxu0
    %v1356 = vadd.f32 %v1070, %v1348
    %v1357 = vadd.f32 %v1071, %v1353
    %v1358 = vadd.f32 %v49, %v1356
    %v1359 = vadd.f32 %v50, %v1357
    %v1360 = vld [vmem:[%s7] sm:$0x1]
    %v1361 = vld [vmem:[%s8] sm:$0x1]
    %v1362 = vsel %vm53, %v1358, 0.0
    %1363 = vadd.xlane.f32.xlu0 %v1362
    %v1364 = vpop.xlane.xlu0 %1363
    %v1365 = vsel %vm53, %v1359, 0.0
    %1366 = vadd.xlane.f32.xlu0 %v1365
    %v1367 = vpop.xlane.xlu0 %1366
    %v1368 = vmul.f32 %v1364, %v60
    %v1369 = vmul.f32 %v1367, %v60
    %v1370 = vsub.f32 %v1358, %v1368
    %v1371 = vsub.f32 %v1359, %v1369
    %v1372 = vmul.f32 %v1370, %v1370
    %v1373 = vmul.f32 %v1371, %v1371
    %v1374 = vsel %vm53, %v1372, 0.0
    %1375 = vadd.xlane.f32.xlu0 %v1374
    %v1376 = vpop.xlane.xlu0 %1375
    %v1377 = vsel %vm53, %v1373, 0.0
    %1378 = vadd.xlane.f32.xlu0 %v1377
    %v1379 = vpop.xlane.xlu0 %1378
    %v1380 = vmul.f32 %v1376, %v60
    %v1381 = vmul.f32 %v1379, %v60
    %v1382 = vadd.f32 %v1380, 1e-05
    %v1383 = vadd.f32 %v1381, 1e-05
    %v1384 = vrsqrt.pop %v1382
    %v1385 = vrsqrt.pop %v1383
    %v1386 = vmul.f32 %v1370, %v1384
    %v1387 = vmul.f32 %v1371, %v1385
    %v1389 = vlaneseq
    %v1390 = vshrl.u32 %v1389, 7
    %v1391 = vsub.s32 0, %v1390
    %v1392 = vrot.slane %v1360, %v1391
    %v1394 = vmul.f32 %v1386, %v1392
    %v1395 = vmul.f32 %v1387, %v1392
    %v1397 = vlaneseq
    %v1398 = vshrl.u32 %v1397, 7
    %v1399 = vsub.s32 0, %v1398
    %v1400 = vrot.slane %v1361, %v1399
    %v1402 = vadd.f32 %v1394, %v1400
    %v1403 = vadd.f32 %v1395, %v1400
    %1404 = vst.msk [vmem:[#allocation4] sm:$0xff] %vm53, %v1402
    %1405 = vst.msk [vmem:[#allocation4 + $0x8] sm:$0xff] %vm53, %v1403
    %v1406 = vld [vmem:[%s9] sm:$0xff]
    %v1407 = vld [vmem:[%s9 + $0x8] sm:$0xff]
    %v1408 = vld [vmem:[%s9 + $0x10] sm:$0xff]
    %v1409 = vld [vmem:[%s9 + $0x18] sm:$0xff]
    %v1410 = vld [vmem:[%s10] sm:$0x1]
    %v1412 = vlaneseq
    %v1413 = vshrl.u32 %v1412, 7
    %v1414 = vsub.s32 0, %v1413
    %v1415 = vrot.slane %v1410, %v1414
    %v1418 = vsel %vm53, %v1402, 0
    %v1421 = vsel %vm53, %v1403, 0
    %1423 = vmatprep.subr.mxu0 0.0
    %1424 = vmatpush1.msra.mxu0 %v1406
    %1425 = vmatprep.subr.mxu0 0.0
    %1426 = vmatpush1.msra.mxu0 %v1407
    %1427 = vmatprep.subr.mxu0 0.0
    %1428 = vmatpush1.msra.mxu0 %v1408
    %1429 = vmatprep.subr.mxu0 0.0
    %1430 = vmatpush1.msra.mxu0 %v1409
    %1431 = vmatprep.subr.mxu0 0.0
    %1432 = vmatpush1.msra.mxu0 0.0
    %1433 = vmatprep.subr.mxu0 0.0
    %1434 = vmatpush1.msra.mxu0 0.0
    %1435 = vmatprep.subr.mxu0 0.0
    %1436 = vmatpush1.msra.mxu0 0.0
    %1437 = vmatprep.subr.mxu0 0.0
    %1438 = vmatpush1.msra.mxu0 0.0
    %1439 = vmatprep.subr.mxu0 0.0
    %1440 = vmatpush1.msra.mxu0 0.0
    %1441 = vmatprep.subr.mxu0 0.0
    %1442 = vmatpush1.msra.mxu0 0.0
    %1443 = vmatprep.subr.mxu0 0.0
    %1444 = vmatpush1.msra.mxu0 0.0
    %1445 = vmatprep.subr.mxu0 0.0
    %1446 = vmatpush1.msra.mxu0 0.0
    %1447 = vmatprep.subr.mxu0 0.0
    %1448 = vmatpush1.msra.mxu0 0.0
    %1449 = vmatprep.subr.mxu0 0.0
    %1450 = vmatpush1.msra.mxu0 0.0
    %1451 = vmatprep.subr.mxu0 0.0
    %1452 = vmatpush1.msra.mxu0 0.0
    %1453 = vmatprep.subr.mxu0 0.0
    %1454 = vmatpush1.msra.mxu0 0.0
    %1455 = vmatprep.subr.mxu0 0.0
    %1456 = vmatpush1.msra.mxu0 0.0
    %1457 = vmatprep.subr.mxu0 0.0
    %1458 = vmatpush1.msra.mxu0 0.0
    %1459 = vmatprep.subr.mxu0 0.0
    %1460 = vmatpush1.msra.mxu0 0.0
    %1461 = vmatprep.subr.mxu0 0.0
    %1462 = vmatpush1.msra.mxu0 0.0
    %1463 = vmatprep.subr.mxu0 0.0
    %1464 = vmatpush1.msra.mxu0 0.0
    %1465 = vmatprep.subr.mxu0 0.0
    %1466 = vmatpush1.msra.mxu0 0.0
    %1467 = vmatprep.subr.mxu0 0.0
    %1468 = vmatpush1.msra.mxu0 0.0
    %1469 = vmatprep.subr.mxu0 0.0
    %1470 = vmatpush1.msra.mxu0 0.0
    %1471 = vmatprep.subr.mxu0 0.0
    %1472 = vmatpush1.msra.mxu0 0.0
    %1473 = vmatprep.subr.mxu0 0.0
    %1474 = vmatpush1.msra.mxu0 0.0
    %1475 = vmatprep.subr.mxu0 0.0
    %1476 = vmatpush1.msra.mxu0 0.0
    %1477 = vmatprep.subr.mxu0 0.0
    %1478 = vmatpush1.msra.mxu0 0.0
    %1479 = vmatprep.subr.mxu0 0.0
    %1480 = vmatpush1.msra.mxu0 0.0
    %1481 = vmatprep.subr.mxu0 0.0
    %1482 = vmatpush1.msra.mxu0 0.0
    %1483 = vmatprep.subr.mxu0 0.0
    %1484 = vmatpush1.msra.mxu0 0.0
    %1485 = vmatprep.subr.mxu0 0.0
    %1486 = vmatpush1.msra.mxu0 0.0
    %1487 = vmatprep.mubr.f32.mxu0 0.0
    %1488 = vmatmul.mubr.f32.gmra.mrb[0].mxu0 %v1418
    %v1489 = vpop.f32.mrb[0].mxu0
    %v1490 = vadd.f32 %v1415, %v1489
    %v1491 = vpop.f32.mrb[0].mxu0
    %1492 = vmatprep.mubr.f32.mxu0 0.0
    %1493 = vmatmul.mubr.f32.gmra.mrb[0].mxu0 %v1421
    %v1494 = vpop.f32.mrb[0].mxu0
    %v1495 = vadd.f32 %v1415, %v1494
    %v1496 = vpop.f32.mrb[0].mxu0
    %1497 = vdwg.mxu0
    %v1498 = vmul.f32 %v1490, 0.5
    %v1499 = vmul.f32 %v1495, 0.5
    %v1500 = vmul.f32 %v1490, %v1490
    %v1501 = vmul.f32 %v1495, %v1495
    %v1502 = vmul.f32 %v1500, %v1490
    %v1503 = vmul.f32 %v1501, %v1495
    %v1504 = vmul.f32 %v1502, 0.044715
    %v1505 = vmul.f32 %v1503, 0.044715
    %v1506 = vadd.f32 %v1490, %v1504
    %v1507 = vadd.f32 %v1495, %v1505
    %v1508 = vmul.f32 %v1506, 0.7978846
    %v1509 = vmul.f32 %v1507, 0.7978846
    %v1510 = vtanh.pop %v1508
    %v1511 = vtanh.pop %v1509
    %v1512 = vadd.f32 %v1510, 1.0
    %v1513 = vadd.f32 %v1511, 1.0
    %v1514 = vmul.f32 %v1498, %v1512
    %v1515 = vmul.f32 %v1499, %v1513
    %v1516 = vld [vmem:[%s11] sm:$0xff]
    %v1517 = vld [vmem:[%s11 + $0x8] sm:$0xff]
    %v1518 = vld [vmem:[%s11 + $0x10] sm:$0xff]
    %v1519 = vld [vmem:[%s11 + $0x18] sm:$0xff]
    %v1520 = vld [vmem:[%s11 + $0x20] sm:$0xff]
    %v1521 = vld [vmem:[%s11 + $0x28] sm:$0xff]
    %v1522 = vld [vmem:[%s11 + $0x30] sm:$0xff]
    %v1523 = vld [vmem:[%s11 + $0x38] sm:$0xff]
    %v1524 = vld [vmem:[%s11 + $0x40] sm:$0xff]
    %v1525 = vld [vmem:[%s11 + $0x48] sm:$0xff]
    %v1526 = vld [vmem:[%s11 + $0x50] sm:$0xff]
    %v1527 = vld [vmem:[%s11 + $0x58] sm:$0xff]
    %v1528 = vld [vmem:[%s11 + $0x60] sm:$0xff]
    %v1529 = vld [vmem:[%s11 + $0x68] sm:$0xff]
    %v1530 = vld [vmem:[%s11 + $0x70] sm:$0xff]
    %v1531 = vld [vmem:[%s11 + $0x78] sm:$0xff]
    %v1532 = vld [vmem:[%s12] sm:$0x1]
    %v1534 = vlaneseq
    %v1535 = vshrl.u32 %v1534, 7
    %v1536 = vsub.s32 0, %v1535
    %v1537 = vrot.slane %v1532, %v1536
    %1539 = vmatprep.subr.mxu0 0.0
    %1540 = vmatpush1.msra.mxu0 %v1516
    %1541 = vmatprep.subr.mxu0 0.0
    %1542 = vmatpush1.msra.mxu0 %v1517
    %1543 = vmatprep.subr.mxu0 0.0
    %1544 = vmatpush1.msra.mxu0 %v1518
    %1545 = vmatprep.subr.mxu0 0.0
    %1546 = vmatpush1.msra.mxu0 %v1519
    %1547 = vmatprep.subr.mxu0 0.0
    %1548 = vmatpush1.msra.mxu0 %v1520
    %1549 = vmatprep.subr.mxu0 0.0
    %1550 = vmatpush1.msra.mxu0 %v1521
    %1551 = vmatprep.subr.mxu0 0.0
    %1552 = vmatpush1.msra.mxu0 %v1522
    %1553 = vmatprep.subr.mxu0 0.0
    %1554 = vmatpush1.msra.mxu0 %v1523
    %1555 = vmatprep.subr.mxu0 0.0
    %1556 = vmatpush1.msra.mxu0 %v1524
    %1557 = vmatprep.subr.mxu0 0.0
    %1558 = vmatpush1.msra.mxu0 %v1525
    %1559 = vmatprep.subr.mxu0 0.0
    %1560 = vmatpush1.msra.mxu0 %v1526
    %1561 = vmatprep.subr.mxu0 0.0
    %1562 = vmatpush1.msra.mxu0 %v1527
    %1563 = vmatprep.subr.mxu0 0.0
    %1564 = vmatpush1.msra.mxu0 %v1528
    %1565 = vmatprep.subr.mxu0 0.0
    %1566 = vmatpush1.msra.mxu0 %v1529
    %1567 = vmatprep.subr.mxu0 0.0
    %1568 = vmatpush1.msra.mxu0 %v1530
    %1569 = vmatprep.subr.mxu0 0.0
    %1570 = vmatpush1.msra.mxu0 %v1531
    %1571 = vmatprep.subr.mxu0 0.0
    %1572 = vmatpush1.msra.mxu0 0.0
    %1573 = vmatprep.subr.mxu0 0.0
    %1574 = vmatpush1.msra.mxu0 0.0
    %1575 = vmatprep.subr.mxu0 0.0
    %1576 = vmatpush1.msra.mxu0 0.0
    %1577 = vmatprep.subr.mxu0 0.0
    %1578 = vmatpush1.msra.mxu0 0.0
    %1579 = vmatprep.subr.mxu0 0.0
    %1580 = vmatpush1.msra.mxu0 0.0
    %1581 = vmatprep.subr.mxu0 0.0
    %1582 = vmatpush1.msra.mxu0 0.0
    %1583 = vmatprep.subr.mxu0 0.0
    %1584 = vmatpush1.msra.mxu0 0.0
    %1585 = vmatprep.subr.mxu0 0.0
    %1586 = vmatpush1.msra.mxu0 0.0
    %1587 = vmatprep.subr.mxu0 0.0
    %1588 = vmatpush1.msra.mxu0 0.0
    %1589 = vmatprep.subr.mxu0 0.0
    %1590 = vmatpush1.msra.mxu0 0.0
    %1591 = vmatprep.subr.mxu0 0.0
    %1592 = vmatpush1.msra.mxu0 0.0
    %1593 = vmatprep.subr.mxu0 0.0
    %1594 = vmatpush1.msra.mxu0 0.0
    %1595 = vmatprep.subr.mxu0 0.0
    %1596 = vmatpush1.msra.mxu0 0.0
    %1597 = vmatprep.subr.mxu0 0.0
    %1598 = vmatpush1.msra.mxu0 0.0
    %1599 = vmatprep.subr.mxu0 0.0
    %1600 = vmatpush1.msra.mxu0 0.0
    %1601 = vmatprep.subr.mxu0 0.0
    %1602 = vmatpush1.msra.mxu0 0.0
    %1603 = vmatprep.mubr.f32.mxu0 0.0
    %1604 = vmatmul.mubr.f32.gmra.mrb[0].mxu0 %v1514
    %v1605 = vpop.f32.mrb[0].mxu0
    %v1606 = vadd.f32 %v1537, %v1605
    %v1607 = vpop.f32.mrb[0].mxu0
    %1608 = vmatprep.mubr.f32.mxu0 0.0
    %1609 = vmatmul.mubr.f32.gmra.mrb[0].mxu0 %v1515
    %v1610 = vpop.f32.mrb[0].mxu0
    %v1611 = vadd.f32 %v1537, %v1610
    %v1612 = vpop.f32.mrb[0].mxu0
    %1613 = vdwg.mxu0
    %1614 = vst.msk [vmem:[#allocation6] sm:$0xff] %vm53, %v1606
    %1615 = vst.msk [vmem:[#allocation6 + $0x8] sm:$0xff] %vm53, %v1611
    %v1616 = vadd.f32 %v1358, %v1606
    %v1617 = vadd.f32 %v1359, %v1611
    %1618 = vst.msk [vmem:[#allocation2] sm:$0xff] %vm53, %v1616
    %1619 = vst.msk [vmem:[#allocation2 + $0x8] sm:$0xff] %vm53, %v1617
    // Predicated region
    $region54: #{tpu_custom_call.1} parent=1 // pred_check
      _
    $region55: #{tpu_custom_call.1} parent=1 // pred_check_branch
      %1621 = sbr.rel (0) target = $region57
    $region56: #{tpu_custom_call.1} parent=1 // pred_region
      %s1623 = ssub.s32 256, 256
      %1624 = vsyncadd [#allocation3], %s1623
      %s1625 = sshll.u32 [#allocation2], 4
      %s1626 = int_to_ptr.vmem [resolvable:$true] %s1625
      %1631 = dma.vmem_to_hbm [thread:$0]  %s1626, 256, %s13, [#allocation3], 128, 128, 8
    $region57: #{tpu_custom_call.1} parent=1 // pred_fallthru
      _
    // Predicated region
    $region58: #{tpu_custom_call.1} parent=1 // pred_check
      _
    $region59: #{tpu_custom_call.1} parent=1 // pred_check_branch
      %1633 = sbr.rel (0) target = $region61
    $region60: #{tpu_custom_call.1} parent=1 // pred_region
      %s1635 = ssub.s32 256, 256
      %1636 = vsyncadd [#allocation5], %s1635
      %s1637 = sshll.u32 [#allocation4], 4
      %s1638 = int_to_ptr.vmem [resolvable:$true] %s1637
      %1643 = dma.vmem_to_hbm [thread:$0]  %s1638, 256, %s14, [#allocation5], 128, 128, 8
    $region61: #{tpu_custom_call.1} parent=1 // pred_fallthru
      _
    // Predicated region
    $region62: #{tpu_custom_call.1} parent=1 // pred_check
      _
    $region63: #{tpu_custom_call.1} parent=1 // pred_check_branch
      %1645 = sbr.rel (0) target = $region65
    $region64: #{tpu_custom_call.1} parent=1 // pred_region
      %s1647 = ssub.s32 256, 256
      %1648 = vsyncadd [#allocation5], %s1647
      %s1649 = sshll.u32 [#allocation6], 4
      %s1650 = int_to_ptr.vmem [resolvable:$true] %s1649
      %1655 = dma.vmem_to_hbm [thread:$0]  %s1650, 256, %s15, [#allocation5], 128, 128, 8
    $region65: #{tpu_custom_call.1} parent=1 // pred_fallthru
      _
    // Predicated region
    $region66: #{tpu_custom_call.1} parent=1 // pred_check
      _
    $region67: #{tpu_custom_call.1} parent=1 // pred_check_branch
      %1657 = sbr.rel (0) target = $region69
    $region68: #{tpu_custom_call.1} parent=1 // pred_region
      %1658 = dma.done [#allocation3], 256
    $region69: #{tpu_custom_call.1} parent=1 // pred_fallthru
      _
    // Predicated region
    $region70: #{tpu_custom_call.1} parent=1 // pred_check
      _
    $region71: #{tpu_custom_call.1} parent=1 // pred_check_branch
      %1660 = sbr.rel (0) target = $region73
    $region72: #{tpu_custom_call.1} parent=1 // pred_region
      %1661 = dma.done [#allocation5], 256
    $region73: #{tpu_custom_call.1} parent=1 // pred_fallthru
      _
    // Predicated region
    $region74: #{tpu_custom_call.1} parent=1 // pred_check
      _
    $region75: #{tpu_custom_call.1} parent=1 // pred_check_branch
      %1663 = sbr.rel (0) target = $region77
    $region76: #{tpu_custom_call.1} parent=1 // pred_region
      %1664 = dma.done [#allocation5], 256
    $region77: #{tpu_custom_call.1} parent=1 // pred_fallthru
      _
    %1665 = vsyncpa [#allocation3], 1
    %1666 = vsyncpa [#allocation5], 1

</llo_original>
